<compile_context>
chip_gen: v7x
topology: tpu7x:2x2x1
jax: 0.10.0
libtpu: 0.0.40
codegen_flags: <defaults>
</compile_context>

<pallas_src>
import jax
import jax.numpy as jnp
from jax import lax
from jax.experimental import pallas as pl
from jax.experimental.pallas import tpu as pltpu

NEG = -1e30          # "minus infinity" for padded tag lanes (finite -> no NaNs)
OUT_LANES = 128      # lane-dense output width


def _crf_nll_kernel(feats_ref, tags_ref, mask_ref, trans_ref, out_ref):
    L, TB, Tp = feats_ref.shape

    # ---- hoisted once per block (JAX does not CSE broadcasts inside loops) ----
    trans = trans_ref[...]                               # (Tp, Tp)
    c = jnp.max(trans, keepdims=True)                    # (1, 1) shift for exp-space
    exp_trans = jnp.exp(trans - c)                       # (Tp, Tp)
    tag_iota = lax.broadcasted_iota(jnp.int32, (TB, Tp), 1)

    def onehot(tags_i):                                  # (TB,1) i32 -> (TB,Tp) f32
        return (tag_iota == tags_i).astype(jnp.float32)

    # ---- step 0 ----
    alpha0 = feats_ref[0]                                # (TB, Tp)  (assumes mask[:,0]==1)
    oh0 = onehot(tags_ref[0])                            # (TB, Tp)
    gold0 = jnp.sum(feats_ref[0] * oh0, axis=1, keepdims=True) * mask_ref[0]  # (TB,1)

    # ---- fused forward + gold-score recursion over time ----
    def body(i, carry):
        alpha, gold, oh_prev = carry
        emit = feats_ref[i]                              # (TB, Tp) -- single load/step
        mask_i = mask_ref[i]                             # (TB, 1)
        tags_i = tags_ref[i]                             # (TB, 1)

        # forward: logsumexp_p(alpha[b,p] + trans[p,q]) + emit[b,q] via MXU matmul
        m_b = jnp.max(alpha, axis=1, keepdims=True)                            # (TB,1)
        p = jnp.exp(alpha - m_b)                                               # (TB,Tp)
        s = jnp.dot(p, exp_trans, preferred_element_type=jnp.float32)          # (TB,Tp)
        new_alpha = jnp.log(s) + m_b + c + emit
        alpha = jnp.where(mask_i > 0.5, new_alpha, alpha)

        # gold: emission at tags[i] + trans[tags[i-1], tags[i]] (one-hot @ trans)
        oh_i = onehot(tags_i)                                                  # (TB,Tp)
        emit_tag = jnp.sum(emit * oh_i, axis=1, keepdims=True)                 # (TB,1)
        rows = jnp.dot(oh_prev, trans, preferred_element_type=jnp.float32)     # trans[tags[i-1],:]
        trans_tag = jnp.sum(rows * oh_i, axis=1, keepdims=True)                # (TB,1)
        gold = gold + (emit_tag + trans_tag) * mask_i

        return alpha, gold, oh_i

    unroll = True if L <= 64 else 4
    alpha, gold, _ = lax.fori_loop(1, L, body, (alpha0, gold0, oh0), unroll=unroll)

    # ---- partition function and NLL ----
    m = jnp.max(alpha, axis=1, keepdims=True)
    all_path = jnp.log(jnp.sum(jnp.exp(alpha - m), axis=1, keepdims=True)) + m  # (TB,1)
    nll = all_path - gold                                                        # (TB,1)

    # lane-dense store (unmasked vst); wrapper reads column 0
    out_ref[...] = jnp.broadcast_to(nll, out_ref.shape)


def crf_forward(feats, tags, mask, trans_m, *, batch_tile=8):
    """feats: (B, L, T) f32, tags: (B, L) int, mask: (B, L) {0,1}.
    Returns (B,) negative log-likelihood (include_start_end_trans=False).
    NOTE: like the PyTorch module, assumes mask[:, 0] == 1 for every real row."""
    B, L, T = feats.shape
    TB = batch_tile                               # multiple of 8 (sublane)
    Bp = ((B + TB - 1) // TB) * TB
    Tp = ((T + 127) // 128) * 128                 # pad tag axis to 128 lanes

    # time-major layout + padding (fake tags get NEG emissions so they never
    # contribute to the partition function; padded batch rows have mask==0).
    feats_t = jnp.transpose(feats, (1, 0, 2)).astype(jnp.float32)    # (L, B, T)
    tags_t = jnp.transpose(tags, (1, 0)).astype(jnp.int32)           # (L, B)
    mask_t = jnp.transpose(mask, (1, 0)).astype(jnp.float32)         # (L, B)

    feats_p = jnp.full((L, Bp, Tp), NEG, jnp.float32).at[:, :B, :T].set(feats_t)
    tags_p = jnp.zeros((L, Bp, 1), jnp.int32).at[:, :B, 0].set(tags_t)
    mask_p = jnp.zeros((L, Bp, 1), jnp.float32).at[:, :B, 0].set(mask_t)
    trans_p = jnp.zeros((Tp, Tp), jnp.float32).at[:T, :T].set(trans_m.astype(jnp.float32))

    grid = (Bp // TB,)
    out = pl.pallas_call(
        _crf_nll_kernel,
        out_shape=jax.ShapeDtypeStruct((Bp, OUT_LANES), jnp.float32),
        grid=grid,
        in_specs=[
            pl.BlockSpec((L, TB, Tp), lambda b: (0, b, 0)),   # feats (pipelined per batch tile)
            pl.BlockSpec((L, TB, 1), lambda b: (0, b, 0)),    # tags
            pl.BlockSpec((L, TB, 1), lambda b: (0, b, 0)),    # mask
            pl.BlockSpec((Tp, Tp), lambda b: (0, 0)),         # trans (replicated)
        ],
        out_specs=pl.BlockSpec((TB, OUT_LANES), lambda b: (b, 0)),
        compiler_params=pltpu.CompilerParams(
            dimension_semantics=("parallel",),                # megacore on v7x
        ),
    )(feats_p, tags_p, mask_p, trans_p)

    return out[:B, 0]


# Pure-JAX reference (mirrors the PyTorch module semantics exactly).
def crf_forward_ref(feats, tags, mask, trans_m):
    logits = jnp.transpose(feats, (1, 0, 2)).astype(jnp.float32)
    tags_t = jnp.transpose(tags, (1, 0)).astype(jnp.int32)
    mask_t = jnp.transpose(mask, (1, 0)).astype(jnp.float32)
    L, B, T = logits.shape
    alpha = logits[0]
    for i in range(1, L):
        tmp = alpha[:, :, None] + trans_m[None, :, :] + logits[i][:, None, :]
        new = jax.nn.logsumexp(tmp, axis=1)
        alpha = new * mask_t[i][:, None] + alpha * (1 - mask_t[i][:, None])
    all_path = jax.nn.logsumexp(alpha, axis=1)
    emit = jnp.take_along_axis(logits, tags_t[:, :, None], axis=2)[:, :, 0] * mask_t
    trans_sc = trans_m[tags_t[:-1], tags_t[1:]] * mask_t[1:]
    gold = jnp.sum(trans_sc + emit[:-1], axis=0) + emit[-1] * mask_t[-1]
    return all_path - gold


if __name__ == "__main__":
    B, L, T = 4, 8, 5  # batch, max_len, tag_size

    key = jax.random.PRNGKey(0)
    k1, k2, k3 = jax.random.split(key, 3)

    # Parameter: trans_m ~ randn(tag_size, tag_size)  (include_start_end_trans=False)
    trans_m = jax.random.normal(k1, (T, T), dtype=jnp.float32)

    feats = jax.random.normal(k2, (B, L, T), dtype=jnp.float32)
    tags = jax.random.randint(k3, (B, L), 0, T, dtype=jnp.int32)
    lengths = jnp.array([8, 6, 5, 8], dtype=jnp.int32)
    mask = (jnp.arange(L)[None, :] < lengths[:, None]).astype(jnp.float32)  # (B, L)

    nll = crf_forward(feats, tags, mask, trans_m)
    jax.block_until_ready(nll)

    ref = crf_forward_ref(feats, tags, mask, trans_m)
    assert nll.shape == (B,)
    assert jnp.allclose(nll, ref, atol=1e-3, rtol=1e-3), (nll, ref)

    # TODO(synk): viterbi_decode and include_start_end_trans=True are not implemented.
    print("KERNEL_OK")
</pallas_src>

<mosaic_0001>
module attributes {stable_mosaic.version = 11 : i64} {
  func.func @_crf_nll_kernel(%arg0: i32, %arg1: memref<8x8x128xf32, #tpu.memory_space<vmem>>, %arg2: memref<8x8x1xi32, #tpu.memory_space<vmem>>, %arg3: memref<8x8x1xf32, #tpu.memory_space<vmem>>, %arg4: memref<128x128xf32, #tpu.memory_space<vmem>>, %arg5: memref<8x128xf32, #tpu.memory_space<vmem>>) attributes {dimension_semantics = [#tpu.dimension_semantics<parallel>], iteration_bounds = array<i64: 1>, scalar_prefetch = 0 : i64, scratch_operands = 0 : i64, tpu.core_type = #tpu.core_type<tc>, window_params = [{transform_indices = @transform_0, window_bounds = array<i64: 8, 8, 128>}, {transform_indices = @transform_1, window_bounds = array<i64: 8, 8, 1>}, {transform_indices = @transform_2, window_bounds = array<i64: 8, 8, 1>}, {pipeline_mode = #tpu.pipeline_mode<synchronous>, transform_indices = @transform_3, window_bounds = array<i64: 128, 128>}, {transform_indices = @transform_4, window_bounds = array<i64: 8, 128>}]} {
    %c0 = arith.constant 0 : index
    %c0_0 = arith.constant 0 : index
    %0 = vector.load %arg4[%c0, %c0_0] : memref<128x128xf32, #tpu.memory_space<vmem>>, vector<128x128xf32>
    %1 = vector.shape_cast %0 : vector<128x128xf32> to vector<1x128x128xf32>
    %cst = arith.constant dense<0xFF800000> : vector<1xf32>
    %2 = vector.multi_reduction <maximumf>, %1, %cst [1, 2] : vector<1x128x128xf32> to vector<1xf32>
    %3 = vector.shape_cast %2 : vector<1xf32> to vector<1x1x1xf32>
    %4 = vector.extract %3[0, 0, 0] : f32 from vector<1x1x1xf32>
    %5 = vector.broadcast %4 : f32 to vector<1x1xf32>
    %6 = vector.broadcast %5 : vector<1x1xf32> to vector<128x128xf32>
    %7 = arith.subf %0, %6 : vector<128x128xf32>
    %8 = math.exp %7 : vector<128x128xf32>
    %9 = tpu.iota {dimensions = array<i32: 1>} : vector<8x128xi32>
    %c0_1 = arith.constant 0 : index
    %c0_2 = arith.constant 0 : index
    %c0_3 = arith.constant 0 : index
    %10 = vector.load %arg1[%c0_1, %c0_2, %c0_3] : memref<8x8x128xf32, #tpu.memory_space<vmem>>, vector<1x8x128xf32>
    %11 = vector.shape_cast %10 : vector<1x8x128xf32> to vector<8x128xf32>
    %c0_4 = arith.constant 0 : index
    %c0_5 = arith.constant 0 : index
    %c0_6 = arith.constant 0 : index
    %12 = vector.load %arg2[%c0_4, %c0_5, %c0_6] : memref<8x8x1xi32, #tpu.memory_space<vmem>>, vector<1x8x1xi32>
    %13 = vector.shape_cast %12 : vector<1x8x1xi32> to vector<8x1xi32>
    %14 = vector.broadcast %13 : vector<8x1xi32> to vector<8x128xi32>
    %15 = arith.cmpi eq, %9, %14 : vector<8x128xi32>
    %16 = arith.extui %15 : vector<8x128xi1> to vector<8x128xi32>
    %17 = arith.sitofp %16 : vector<8x128xi32> to vector<8x128xf32>
    %c0_7 = arith.constant 0 : index
    %c0_8 = arith.constant 0 : index
    %c0_9 = arith.constant 0 : index
    %18 = vector.load %arg1[%c0_7, %c0_8, %c0_9] : memref<8x8x128xf32, #tpu.memory_space<vmem>>, vector<1x8x128xf32>
    %19 = vector.shape_cast %18 : vector<1x8x128xf32> to vector<8x128xf32>
    %20 = arith.mulf %19, %17 : vector<8x128xf32>
    %cst_10 = arith.constant dense<0.000000e+00> : vector<8xf32>
    %21 = vector.multi_reduction <add>, %20, %cst_10 [1] : vector<8x128xf32> to vector<8xf32>
    %22 = vector.shape_cast %21 : vector<8xf32> to vector<8x1xf32>
    %c0_11 = arith.constant 0 : index
    %c0_12 = arith.constant 0 : index
    %c0_13 = arith.constant 0 : index
    %23 = vector.load %arg3[%c0_11, %c0_12, %c0_13] : memref<8x8x1xf32, #tpu.memory_space<vmem>>, vector<1x8x1xf32>
    %24 = vector.shape_cast %23 : vector<1x8x1xf32> to vector<8x1xf32>
    %25 = arith.mulf %22, %24 : vector<8x1xf32>
    %c1_i32 = arith.constant 1 : i32
    %26 = arith.index_cast %c1_i32 : i32 to index
    %c0_14 = arith.constant 0 : index
    %c0_15 = arith.constant 0 : index
    %27 = vector.load %arg1[%26, %c0_14, %c0_15] : memref<8x8x128xf32, #tpu.memory_space<vmem>>, vector<1x8x128xf32>
    %28 = vector.shape_cast %27 : vector<1x8x128xf32> to vector<8x128xf32>
    %29 = arith.index_cast %c1_i32 : i32 to index
    %c0_16 = arith.constant 0 : index
    %c0_17 = arith.constant 0 : index
    %30 = vector.load %arg3[%29, %c0_16, %c0_17] : memref<8x8x1xf32, #tpu.memory_space<vmem>>, vector<1x8x1xf32>
    %31 = vector.shape_cast %30 : vector<1x8x1xf32> to vector<8x1xf32>
    %32 = arith.index_cast %c1_i32 : i32 to index
    %c0_18 = arith.constant 0 : index
    %c0_19 = arith.constant 0 : index
    %33 = vector.load %arg2[%32, %c0_18, %c0_19] : memref<8x8x1xi32, #tpu.memory_space<vmem>>, vector<1x8x1xi32>
    %34 = vector.shape_cast %33 : vector<1x8x1xi32> to vector<8x1xi32>
    %cst_20 = arith.constant dense<0xFF800000> : vector<8xf32>
    %35 = vector.multi_reduction <maximumf>, %11, %cst_20 [1] : vector<8x128xf32> to vector<8xf32>
    %36 = vector.shape_cast %35 : vector<8xf32> to vector<8x1xf32>
    %37 = vector.broadcast %36 : vector<8x1xf32> to vector<8x128xf32>
    %38 = arith.subf %11, %37 : vector<8x128xf32>
    %39 = math.exp %38 : vector<8x128xf32>
    %cst_21 = arith.constant dense<0.000000e+00> : vector<8x128xf32>
    %40 = tpu.matmul %39, %8, %cst_21 {dimension_numbers = #tpu.dot_dimension_numbers<[1], [0], [0], [1], [0, 0, 1, 1], [], []>} : vector<8x128xf32>, vector<128x128xf32>, vector<8x128xf32> -> vector<8x128xf32>
    %41 = math.log %40 : vector<8x128xf32>
    %42 = vector.broadcast %36 : vector<8x1xf32> to vector<8x128xf32>
    %43 = arith.addf %41, %42 : vector<8x128xf32>
    %44 = vector.broadcast %5 : vector<1x1xf32> to vector<8x128xf32>
    %45 = arith.addf %43, %44 : vector<8x128xf32>
    %46 = arith.addf %45, %28 : vector<8x128xf32>
    %cst_22 = arith.constant 5.000000e-01 : f32
    %47 = vector.broadcast %cst_22 : f32 to vector<8x1xf32>
    %48 = arith.cmpf ogt, %31, %47 : vector<8x1xf32>
    %49 = vector.shape_cast %48 : vector<8x1xi1> to vector<8x1xi1>
    %50 = vector.broadcast %49 : vector<8x1xi1> to vector<8x128xi1>
    %51 = arith.select %50, %46, %11 : vector<8x128xi1>, vector<8x128xf32>
    %52 = vector.broadcast %34 : vector<8x1xi32> to vector<8x128xi32>
    %53 = arith.cmpi eq, %9, %52 : vector<8x128xi32>
    %54 = arith.extui %53 : vector<8x128xi1> to vector<8x128xi32>
    %55 = arith.sitofp %54 : vector<8x128xi32> to vector<8x128xf32>
    %56 = arith.mulf %28, %55 : vector<8x128xf32>
    %cst_23 = arith.constant dense<0.000000e+00> : vector<8xf32>
    %57 = vector.multi_reduction <add>, %56, %cst_23 [1] : vector<8x128xf32> to vector<8xf32>
    %58 = vector.shape_cast %57 : vector<8xf32> to vector<8x1xf32>
    %cst_24 = arith.constant dense<0.000000e+00> : vector<8x128xf32>
    %59 = tpu.matmul %17, %0, %cst_24 {dimension_numbers = #tpu.dot_dimension_numbers<[1], [0], [0], [1], [0, 0, 1, 1], [], []>} : vector<8x128xf32>, vector<128x128xf32>, vector<8x128xf32> -> vector<8x128xf32>
    %60 = arith.mulf %59, %55 : vector<8x128xf32>
    %cst_25 = arith.constant dense<0.000000e+00> : vector<8xf32>
    %61 = vector.multi_reduction <add>, %60, %cst_25 [1] : vector<8x128xf32> to vector<8xf32>
    %62 = vector.shape_cast %61 : vector<8xf32> to vector<8x1xf32>
    %63 = arith.addf %58, %62 : vector<8x1xf32>
    %64 = arith.mulf %63, %31 : vector<8x1xf32>
    %65 = arith.addf %25, %64 : vector<8x1xf32>
    %c2_i32 = arith.constant 2 : i32
    %66 = arith.index_cast %c2_i32 : i32 to index
    %c0_26 = arith.constant 0 : index
    %c0_27 = arith.constant 0 : index
    %67 = vector.load %arg1[%66, %c0_26, %c0_27] : memref<8x8x128xf32, #tpu.memory_space<vmem>>, vector<1x8x128xf32>
    %68 = vector.shape_cast %67 : vector<1x8x128xf32> to vector<8x128xf32>
    %69 = arith.index_cast %c2_i32 : i32 to index
    %c0_28 = arith.constant 0 : index
    %c0_29 = arith.constant 0 : index
    %70 = vector.load %arg3[%69, %c0_28, %c0_29] : memref<8x8x1xf32, #tpu.memory_space<vmem>>, vector<1x8x1xf32>
    %71 = vector.shape_cast %70 : vector<1x8x1xf32> to vector<8x1xf32>
    %72 = arith.index_cast %c2_i32 : i32 to index
    %c0_30 = arith.constant 0 : index
    %c0_31 = arith.constant 0 : index
    %73 = vector.load %arg2[%72, %c0_30, %c0_31] : memref<8x8x1xi32, #tpu.memory_space<vmem>>, vector<1x8x1xi32>
    %74 = vector.shape_cast %73 : vector<1x8x1xi32> to vector<8x1xi32>
    %cst_32 = arith.constant dense<0xFF800000> : vector<8xf32>
    %75 = vector.multi_reduction <maximumf>, %51, %cst_32 [1] : vector<8x128xf32> to vector<8xf32>
    %76 = vector.shape_cast %75 : vector<8xf32> to vector<8x1xf32>
    %77 = vector.broadcast %76 : vector<8x1xf32> to vector<8x128xf32>
    %78 = arith.subf %51, %77 : vector<8x128xf32>
    %79 = math.exp %78 : vector<8x128xf32>
    %cst_33 = arith.constant dense<0.000000e+00> : vector<8x128xf32>
    %80 = tpu.matmul %79, %8, %cst_33 {dimension_numbers = #tpu.dot_dimension_numbers<[1], [0], [0], [1], [0, 0, 1, 1], [], []>} : vector<8x128xf32>, vector<128x128xf32>, vector<8x128xf32> -> vector<8x128xf32>
    %81 = math.log %80 : vector<8x128xf32>
    %82 = vector.broadcast %76 : vector<8x1xf32> to vector<8x128xf32>
    %83 = arith.addf %81, %82 : vector<8x128xf32>
    %84 = vector.broadcast %5 : vector<1x1xf32> to vector<8x128xf32>
    %85 = arith.addf %83, %84 : vector<8x128xf32>
    %86 = arith.addf %85, %68 : vector<8x128xf32>
    %cst_34 = arith.constant 5.000000e-01 : f32
    %87 = vector.broadcast %cst_34 : f32 to vector<8x1xf32>
    %88 = arith.cmpf ogt, %71, %87 : vector<8x1xf32>
    %89 = vector.shape_cast %88 : vector<8x1xi1> to vector<8x1xi1>
    %90 = vector.broadcast %89 : vector<8x1xi1> to vector<8x128xi1>
    %91 = arith.select %90, %86, %51 : vector<8x128xi1>, vector<8x128xf32>
    %92 = vector.broadcast %74 : vector<8x1xi32> to vector<8x128xi32>
    %93 = arith.cmpi eq, %9, %92 : vector<8x128xi32>
    %94 = arith.extui %93 : vector<8x128xi1> to vector<8x128xi32>
    %95 = arith.sitofp %94 : vector<8x128xi32> to vector<8x128xf32>
    %96 = arith.mulf %68, %95 : vector<8x128xf32>
    %cst_35 = arith.constant dense<0.000000e+00> : vector<8xf32>
    %97 = vector.multi_reduction <add>, %96, %cst_35 [1] : vector<8x128xf32> to vector<8xf32>
    %98 = vector.shape_cast %97 : vector<8xf32> to vector<8x1xf32>
    %cst_36 = arith.constant dense<0.000000e+00> : vector<8x128xf32>
    %99 = tpu.matmul %55, %0, %cst_36 {dimension_numbers = #tpu.dot_dimension_numbers<[1], [0], [0], [1], [0, 0, 1, 1], [], []>} : vector<8x128xf32>, vector<128x128xf32>, vector<8x128xf32> -> vector<8x128xf32>
    %100 = arith.mulf %99, %95 : vector<8x128xf32>
    %cst_37 = arith.constant dense<0.000000e+00> : vector<8xf32>
    %101 = vector.multi_reduction <add>, %100, %cst_37 [1] : vector<8x128xf32> to vector<8xf32>
    %102 = vector.shape_cast %101 : vector<8xf32> to vector<8x1xf32>
    %103 = arith.addf %98, %102 : vector<8x1xf32>
    %104 = arith.mulf %103, %71 : vector<8x1xf32>
    %105 = arith.addf %65, %104 : vector<8x1xf32>
    %c3_i32 = arith.constant 3 : i32
    %106 = arith.index_cast %c3_i32 : i32 to index
    %c0_38 = arith.constant 0 : index
    %c0_39 = arith.constant 0 : index
    %107 = vector.load %arg1[%106, %c0_38, %c0_39] : memref<8x8x128xf32, #tpu.memory_space<vmem>>, vector<1x8x128xf32>
    %108 = vector.shape_cast %107 : vector<1x8x128xf32> to vector<8x128xf32>
    %109 = arith.index_cast %c3_i32 : i32 to index
    %c0_40 = arith.constant 0 : index
    %c0_41 = arith.constant 0 : index
    %110 = vector.load %arg3[%109, %c0_40, %c0_41] : memref<8x8x1xf32, #tpu.memory_space<vmem>>, vector<1x8x1xf32>
    %111 = vector.shape_cast %110 : vector<1x8x1xf32> to vector<8x1xf32>
    %112 = arith.index_cast %c3_i32 : i32 to index
    %c0_42 = arith.constant 0 : index
    %c0_43 = arith.constant 0 : index
    %113 = vector.load %arg2[%112, %c0_42, %c0_43] : memref<8x8x1xi32, #tpu.memory_space<vmem>>, vector<1x8x1xi32>
    %114 = vector.shape_cast %113 : vector<1x8x1xi32> to vector<8x1xi32>
    %cst_44 = arith.constant dense<0xFF800000> : vector<8xf32>
    %115 = vector.multi_reduction <maximumf>, %91, %cst_44 [1] : vector<8x128xf32> to vector<8xf32>
    %116 = vector.shape_cast %115 : vector<8xf32> to vector<8x1xf32>
    %117 = vector.broadcast %116 : vector<8x1xf32> to vector<8x128xf32>
    %118 = arith.subf %91, %117 : vector<8x128xf32>
    %119 = math.exp %118 : vector<8x128xf32>
    %cst_45 = arith.constant dense<0.000000e+00> : vector<8x128xf32>
    %120 = tpu.matmul %119, %8, %cst_45 {dimension_numbers = #tpu.dot_dimension_numbers<[1], [0], [0], [1], [0, 0, 1, 1], [], []>} : vector<8x128xf32>, vector<128x128xf32>, vector<8x128xf32> -> vector<8x128xf32>
    %121 = math.log %120 : vector<8x128xf32>
    %122 = vector.broadcast %116 : vector<8x1xf32> to vector<8x128xf32>
    %123 = arith.addf %121, %122 : vector<8x128xf32>
    %124 = vector.broadcast %5 : vector<1x1xf32> to vector<8x128xf32>
    %125 = arith.addf %123, %124 : vector<8x128xf32>
    %126 = arith.addf %125, %108 : vector<8x128xf32>
    %cst_46 = arith.constant 5.000000e-01 : f32
    %127 = vector.broadcast %cst_46 : f32 to vector<8x1xf32>
    %128 = arith.cmpf ogt, %111, %127 : vector<8x1xf32>
    %129 = vector.shape_cast %128 : vector<8x1xi1> to vector<8x1xi1>
    %130 = vector.broadcast %129 : vector<8x1xi1> to vector<8x128xi1>
    %131 = arith.select %130, %126, %91 : vector<8x128xi1>, vector<8x128xf32>
    %132 = vector.broadcast %114 : vector<8x1xi32> to vector<8x128xi32>
    %133 = arith.cmpi eq, %9, %132 : vector<8x128xi32>
    %134 = arith.extui %133 : vector<8x128xi1> to vector<8x128xi32>
    %135 = arith.sitofp %134 : vector<8x128xi32> to vector<8x128xf32>
    %136 = arith.mulf %108, %135 : vector<8x128xf32>
    %cst_47 = arith.constant dense<0.000000e+00> : vector<8xf32>
    %137 = vector.multi_reduction <add>, %136, %cst_47 [1] : vector<8x128xf32> to vector<8xf32>
    %138 = vector.shape_cast %137 : vector<8xf32> to vector<8x1xf32>
    %cst_48 = arith.constant dense<0.000000e+00> : vector<8x128xf32>
    %139 = tpu.matmul %95, %0, %cst_48 {dimension_numbers = #tpu.dot_dimension_numbers<[1], [0], [0], [1], [0, 0, 1, 1], [], []>} : vector<8x128xf32>, vector<128x128xf32>, vector<8x128xf32> -> vector<8x128xf32>
    %140 = arith.mulf %139, %135 : vector<8x128xf32>
    %cst_49 = arith.constant dense<0.000000e+00> : vector<8xf32>
    %141 = vector.multi_reduction <add>, %140, %cst_49 [1] : vector<8x128xf32> to vector<8xf32>
    %142 = vector.shape_cast %141 : vector<8xf32> to vector<8x1xf32>
    %143 = arith.addf %138, %142 : vector<8x1xf32>
    %144 = arith.mulf %143, %111 : vector<8x1xf32>
    %145 = arith.addf %105, %144 : vector<8x1xf32>
    %c4_i32 = arith.constant 4 : i32
    %146 = arith.index_cast %c4_i32 : i32 to index
    %c0_50 = arith.constant 0 : index
    %c0_51 = arith.constant 0 : index
    %147 = vector.load %arg1[%146, %c0_50, %c0_51] : memref<8x8x128xf32, #tpu.memory_space<vmem>>, vector<1x8x128xf32>
    %148 = vector.shape_cast %147 : vector<1x8x128xf32> to vector<8x128xf32>
    %149 = arith.index_cast %c4_i32 : i32 to index
    %c0_52 = arith.constant 0 : index
    %c0_53 = arith.constant 0 : index
    %150 = vector.load %arg3[%149, %c0_52, %c0_53] : memref<8x8x1xf32, #tpu.memory_space<vmem>>, vector<1x8x1xf32>
    %151 = vector.shape_cast %150 : vector<1x8x1xf32> to vector<8x1xf32>
    %152 = arith.index_cast %c4_i32 : i32 to index
    %c0_54 = arith.constant 0 : index
    %c0_55 = arith.constant 0 : index
    %153 = vector.load %arg2[%152, %c0_54, %c0_55] : memref<8x8x1xi32, #tpu.memory_space<vmem>>, vector<1x8x1xi32>
    %154 = vector.shape_cast %153 : vector<1x8x1xi32> to vector<8x1xi32>
    %cst_56 = arith.constant dense<0xFF800000> : vector<8xf32>
    %155 = vector.multi_reduction <maximumf>, %131, %cst_56 [1] : vector<8x128xf32> to vector<8xf32>
    %156 = vector.shape_cast %155 : vector<8xf32> to vector<8x1xf32>
    %157 = vector.broadcast %156 : vector<8x1xf32> to vector<8x128xf32>
    %158 = arith.subf %131, %157 : vector<8x128xf32>
    %159 = math.exp %158 : vector<8x128xf32>
    %cst_57 = arith.constant dense<0.000000e+00> : vector<8x128xf32>
    %160 = tpu.matmul %159, %8, %cst_57 {dimension_numbers = #tpu.dot_dimension_numbers<[1], [0], [0], [1], [0, 0, 1, 1], [], []>} : vector<8x128xf32>, vector<128x128xf32>, vector<8x128xf32> -> vector<8x128xf32>
    %161 = math.log %160 : vector<8x128xf32>
    %162 = vector.broadcast %156 : vector<8x1xf32> to vector<8x128xf32>
    %163 = arith.addf %161, %162 : vector<8x128xf32>
    %164 = vector.broadcast %5 : vector<1x1xf32> to vector<8x128xf32>
    %165 = arith.addf %163, %164 : vector<8x128xf32>
    %166 = arith.addf %165, %148 : vector<8x128xf32>
    %cst_58 = arith.constant 5.000000e-01 : f32
    %167 = vector.broadcast %cst_58 : f32 to vector<8x1xf32>
    %168 = arith.cmpf ogt, %151, %167 : vector<8x1xf32>
    %169 = vector.shape_cast %168 : vector<8x1xi1> to vector<8x1xi1>
    %170 = vector.broadcast %169 : vector<8x1xi1> to vector<8x128xi1>
    %171 = arith.select %170, %166, %131 : vector<8x128xi1>, vector<8x128xf32>
    %172 = vector.broadcast %154 : vector<8x1xi32> to vector<8x128xi32>
    %173 = arith.cmpi eq, %9, %172 : vector<8x128xi32>
    %174 = arith.extui %173 : vector<8x128xi1> to vector<8x128xi32>
    %175 = arith.sitofp %174 : vector<8x128xi32> to vector<8x128xf32>
    %176 = arith.mulf %148, %175 : vector<8x128xf32>
    %cst_59 = arith.constant dense<0.000000e+00> : vector<8xf32>
    %177 = vector.multi_reduction <add>, %176, %cst_59 [1] : vector<8x128xf32> to vector<8xf32>
    %178 = vector.shape_cast %177 : vector<8xf32> to vector<8x1xf32>
    %cst_60 = arith.constant dense<0.000000e+00> : vector<8x128xf32>
    %179 = tpu.matmul %135, %0, %cst_60 {dimension_numbers = #tpu.dot_dimension_numbers<[1], [0], [0], [1], [0, 0, 1, 1], [], []>} : vector<8x128xf32>, vector<128x128xf32>, vector<8x128xf32> -> vector<8x128xf32>
    %180 = arith.mulf %179, %175 : vector<8x128xf32>
    %cst_61 = arith.constant dense<0.000000e+00> : vector<8xf32>
    %181 = vector.multi_reduction <add>, %180, %cst_61 [1] : vector<8x128xf32> to vector<8xf32>
    %182 = vector.shape_cast %181 : vector<8xf32> to vector<8x1xf32>
    %183 = arith.addf %178, %182 : vector<8x1xf32>
    %184 = arith.mulf %183, %151 : vector<8x1xf32>
    %185 = arith.addf %145, %184 : vector<8x1xf32>
    %c5_i32 = arith.constant 5 : i32
    %186 = arith.index_cast %c5_i32 : i32 to index
    %c0_62 = arith.constant 0 : index
    %c0_63 = arith.constant 0 : index
    %187 = vector.load %arg1[%186, %c0_62, %c0_63] : memref<8x8x128xf32, #tpu.memory_space<vmem>>, vector<1x8x128xf32>
    %188 = vector.shape_cast %187 : vector<1x8x128xf32> to vector<8x128xf32>
    %189 = arith.index_cast %c5_i32 : i32 to index
    %c0_64 = arith.constant 0 : index
    %c0_65 = arith.constant 0 : index
    %190 = vector.load %arg3[%189, %c0_64, %c0_65] : memref<8x8x1xf32, #tpu.memory_space<vmem>>, vector<1x8x1xf32>
    %191 = vector.shape_cast %190 : vector<1x8x1xf32> to vector<8x1xf32>
    %192 = arith.index_cast %c5_i32 : i32 to index
    %c0_66 = arith.constant 0 : index
    %c0_67 = arith.constant 0 : index
    %193 = vector.load %arg2[%192, %c0_66, %c0_67] : memref<8x8x1xi32, #tpu.memory_space<vmem>>, vector<1x8x1xi32>
    %194 = vector.shape_cast %193 : vector<1x8x1xi32> to vector<8x1xi32>
    %cst_68 = arith.constant dense<0xFF800000> : vector<8xf32>
    %195 = vector.multi_reduction <maximumf>, %171, %cst_68 [1] : vector<8x128xf32> to vector<8xf32>
    %196 = vector.shape_cast %195 : vector<8xf32> to vector<8x1xf32>
    %197 = vector.broadcast %196 : vector<8x1xf32> to vector<8x128xf32>
    %198 = arith.subf %171, %197 : vector<8x128xf32>
    %199 = math.exp %198 : vector<8x128xf32>
    %cst_69 = arith.constant dense<0.000000e+00> : vector<8x128xf32>
    %200 = tpu.matmul %199, %8, %cst_69 {dimension_numbers = #tpu.dot_dimension_numbers<[1], [0], [0], [1], [0, 0, 1, 1], [], []>} : vector<8x128xf32>, vector<128x128xf32>, vector<8x128xf32> -> vector<8x128xf32>
    %201 = math.log %200 : vector<8x128xf32>
    %202 = vector.broadcast %196 : vector<8x1xf32> to vector<8x128xf32>
    %203 = arith.addf %201, %202 : vector<8x128xf32>
    %204 = vector.broadcast %5 : vector<1x1xf32> to vector<8x128xf32>
    %205 = arith.addf %203, %204 : vector<8x128xf32>
    %206 = arith.addf %205, %188 : vector<8x128xf32>
    %cst_70 = arith.constant 5.000000e-01 : f32
    %207 = vector.broadcast %cst_70 : f32 to vector<8x1xf32>
    %208 = arith.cmpf ogt, %191, %207 : vector<8x1xf32>
    %209 = vector.shape_cast %208 : vector<8x1xi1> to vector<8x1xi1>
    %210 = vector.broadcast %209 : vector<8x1xi1> to vector<8x128xi1>
    %211 = arith.select %210, %206, %171 : vector<8x128xi1>, vector<8x128xf32>
    %212 = vector.broadcast %194 : vector<8x1xi32> to vector<8x128xi32>
    %213 = arith.cmpi eq, %9, %212 : vector<8x128xi32>
    %214 = arith.extui %213 : vector<8x128xi1> to vector<8x128xi32>
    %215 = arith.sitofp %214 : vector<8x128xi32> to vector<8x128xf32>
    %216 = arith.mulf %188, %215 : vector<8x128xf32>
    %cst_71 = arith.constant dense<0.000000e+00> : vector<8xf32>
    %217 = vector.multi_reduction <add>, %216, %cst_71 [1] : vector<8x128xf32> to vector<8xf32>
    %218 = vector.shape_cast %217 : vector<8xf32> to vector<8x1xf32>
    %cst_72 = arith.constant dense<0.000000e+00> : vector<8x128xf32>
    %219 = tpu.matmul %175, %0, %cst_72 {dimension_numbers = #tpu.dot_dimension_numbers<[1], [0], [0], [1], [0, 0, 1, 1], [], []>} : vector<8x128xf32>, vector<128x128xf32>, vector<8x128xf32> -> vector<8x128xf32>
    %220 = arith.mulf %219, %215 : vector<8x128xf32>
    %cst_73 = arith.constant dense<0.000000e+00> : vector<8xf32>
    %221 = vector.multi_reduction <add>, %220, %cst_73 [1] : vector<8x128xf32> to vector<8xf32>
    %222 = vector.shape_cast %221 : vector<8xf32> to vector<8x1xf32>
    %223 = arith.addf %218, %222 : vector<8x1xf32>
    %224 = arith.mulf %223, %191 : vector<8x1xf32>
    %225 = arith.addf %185, %224 : vector<8x1xf32>
    %c6_i32 = arith.constant 6 : i32
    %226 = arith.index_cast %c6_i32 : i32 to index
    %c0_74 = arith.constant 0 : index
    %c0_75 = arith.constant 0 : index
    %227 = vector.load %arg1[%226, %c0_74, %c0_75] : memref<8x8x128xf32, #tpu.memory_space<vmem>>, vector<1x8x128xf32>
    %228 = vector.shape_cast %227 : vector<1x8x128xf32> to vector<8x128xf32>
    %229 = arith.index_cast %c6_i32 : i32 to index
    %c0_76 = arith.constant 0 : index
    %c0_77 = arith.constant 0 : index
    %230 = vector.load %arg3[%229, %c0_76, %c0_77] : memref<8x8x1xf32, #tpu.memory_space<vmem>>, vector<1x8x1xf32>
    %231 = vector.shape_cast %230 : vector<1x8x1xf32> to vector<8x1xf32>
    %232 = arith.index_cast %c6_i32 : i32 to index
    %c0_78 = arith.constant 0 : index
    %c0_79 = arith.constant 0 : index
    %233 = vector.load %arg2[%232, %c0_78, %c0_79] : memref<8x8x1xi32, #tpu.memory_space<vmem>>, vector<1x8x1xi32>
    %234 = vector.shape_cast %233 : vector<1x8x1xi32> to vector<8x1xi32>
    %cst_80 = arith.constant dense<0xFF800000> : vector<8xf32>
    %235 = vector.multi_reduction <maximumf>, %211, %cst_80 [1] : vector<8x128xf32> to vector<8xf32>
    %236 = vector.shape_cast %235 : vector<8xf32> to vector<8x1xf32>
    %237 = vector.broadcast %236 : vector<8x1xf32> to vector<8x128xf32>
    %238 = arith.subf %211, %237 : vector<8x128xf32>
    %239 = math.exp %238 : vector<8x128xf32>
    %cst_81 = arith.constant dense<0.000000e+00> : vector<8x128xf32>
    %240 = tpu.matmul %239, %8, %cst_81 {dimension_numbers = #tpu.dot_dimension_numbers<[1], [0], [0], [1], [0, 0, 1, 1], [], []>} : vector<8x128xf32>, vector<128x128xf32>, vector<8x128xf32> -> vector<8x128xf32>
    %241 = math.log %240 : vector<8x128xf32>
    %242 = vector.broadcast %236 : vector<8x1xf32> to vector<8x128xf32>
    %243 = arith.addf %241, %242 : vector<8x128xf32>
    %244 = vector.broadcast %5 : vector<1x1xf32> to vector<8x128xf32>
    %245 = arith.addf %243, %244 : vector<8x128xf32>
    %246 = arith.addf %245, %228 : vector<8x128xf32>
    %cst_82 = arith.constant 5.000000e-01 : f32
    %247 = vector.broadcast %cst_82 : f32 to vector<8x1xf32>
    %248 = arith.cmpf ogt, %231, %247 : vector<8x1xf32>
    %249 = vector.shape_cast %248 : vector<8x1xi1> to vector<8x1xi1>
    %250 = vector.broadcast %249 : vector<8x1xi1> to vector<8x128xi1>
    %251 = arith.select %250, %246, %211 : vector<8x128xi1>, vector<8x128xf32>
    %252 = vector.broadcast %234 : vector<8x1xi32> to vector<8x128xi32>
    %253 = arith.cmpi eq, %9, %252 : vector<8x128xi32>
    %254 = arith.extui %253 : vector<8x128xi1> to vector<8x128xi32>
    %255 = arith.sitofp %254 : vector<8x128xi32> to vector<8x128xf32>
    %256 = arith.mulf %228, %255 : vector<8x128xf32>
    %cst_83 = arith.constant dense<0.000000e+00> : vector<8xf32>
    %257 = vector.multi_reduction <add>, %256, %cst_83 [1] : vector<8x128xf32> to vector<8xf32>
    %258 = vector.shape_cast %257 : vector<8xf32> to vector<8x1xf32>
    %cst_84 = arith.constant dense<0.000000e+00> : vector<8x128xf32>
    %259 = tpu.matmul %215, %0, %cst_84 {dimension_numbers = #tpu.dot_dimension_numbers<[1], [0], [0], [1], [0, 0, 1, 1], [], []>} : vector<8x128xf32>, vector<128x128xf32>, vector<8x128xf32> -> vector<8x128xf32>
    %260 = arith.mulf %259, %255 : vector<8x128xf32>
    %cst_85 = arith.constant dense<0.000000e+00> : vector<8xf32>
    %261 = vector.multi_reduction <add>, %260, %cst_85 [1] : vector<8x128xf32> to vector<8xf32>
    %262 = vector.shape_cast %261 : vector<8xf32> to vector<8x1xf32>
    %263 = arith.addf %258, %262 : vector<8x1xf32>
    %264 = arith.mulf %263, %231 : vector<8x1xf32>
    %265 = arith.addf %225, %264 : vector<8x1xf32>
    %c7_i32 = arith.constant 7 : i32
    %266 = arith.index_cast %c7_i32 : i32 to index
    %c0_86 = arith.constant 0 : index
    %c0_87 = arith.constant 0 : index
    %267 = vector.load %arg1[%266, %c0_86, %c0_87] : memref<8x8x128xf32, #tpu.memory_space<vmem>>, vector<1x8x128xf32>
    %268 = vector.shape_cast %267 : vector<1x8x128xf32> to vector<8x128xf32>
    %269 = arith.index_cast %c7_i32 : i32 to index
    %c0_88 = arith.constant 0 : index
    %c0_89 = arith.constant 0 : index
    %270 = vector.load %arg3[%269, %c0_88, %c0_89] : memref<8x8x1xf32, #tpu.memory_space<vmem>>, vector<1x8x1xf32>
    %271 = vector.shape_cast %270 : vector<1x8x1xf32> to vector<8x1xf32>
    %272 = arith.index_cast %c7_i32 : i32 to index
    %c0_90 = arith.constant 0 : index
    %c0_91 = arith.constant 0 : index
    %273 = vector.load %arg2[%272, %c0_90, %c0_91] : memref<8x8x1xi32, #tpu.memory_space<vmem>>, vector<1x8x1xi32>
    %274 = vector.shape_cast %273 : vector<1x8x1xi32> to vector<8x1xi32>
    %cst_92 = arith.constant dense<0xFF800000> : vector<8xf32>
    %275 = vector.multi_reduction <maximumf>, %251, %cst_92 [1] : vector<8x128xf32> to vector<8xf32>
    %276 = vector.shape_cast %275 : vector<8xf32> to vector<8x1xf32>
    %277 = vector.broadcast %276 : vector<8x1xf32> to vector<8x128xf32>
    %278 = arith.subf %251, %277 : vector<8x128xf32>
    %279 = math.exp %278 : vector<8x128xf32>
    %cst_93 = arith.constant dense<0.000000e+00> : vector<8x128xf32>
    %280 = tpu.matmul %279, %8, %cst_93 {dimension_numbers = #tpu.dot_dimension_numbers<[1], [0], [0], [1], [0, 0, 1, 1], [], []>} : vector<8x128xf32>, vector<128x128xf32>, vector<8x128xf32> -> vector<8x128xf32>
    %281 = math.log %280 : vector<8x128xf32>
    %282 = vector.broadcast %276 : vector<8x1xf32> to vector<8x128xf32>
    %283 = arith.addf %281, %282 : vector<8x128xf32>
    %284 = vector.broadcast %5 : vector<1x1xf32> to vector<8x128xf32>
    %285 = arith.addf %283, %284 : vector<8x128xf32>
    %286 = arith.addf %285, %268 : vector<8x128xf32>
    %cst_94 = arith.constant 5.000000e-01 : f32
    %287 = vector.broadcast %cst_94 : f32 to vector<8x1xf32>
    %288 = arith.cmpf ogt, %271, %287 : vector<8x1xf32>
    %289 = vector.shape_cast %288 : vector<8x1xi1> to vector<8x1xi1>
    %290 = vector.broadcast %289 : vector<8x1xi1> to vector<8x128xi1>
    %291 = arith.select %290, %286, %251 : vector<8x128xi1>, vector<8x128xf32>
    %292 = vector.broadcast %274 : vector<8x1xi32> to vector<8x128xi32>
    %293 = arith.cmpi eq, %9, %292 : vector<8x128xi32>
    %294 = arith.extui %293 : vector<8x128xi1> to vector<8x128xi32>
    %295 = arith.sitofp %294 : vector<8x128xi32> to vector<8x128xf32>
    %296 = arith.mulf %268, %295 : vector<8x128xf32>
    %cst_95 = arith.constant dense<0.000000e+00> : vector<8xf32>
    %297 = vector.multi_reduction <add>, %296, %cst_95 [1] : vector<8x128xf32> to vector<8xf32>
    %298 = vector.shape_cast %297 : vector<8xf32> to vector<8x1xf32>
    %cst_96 = arith.constant dense<0.000000e+00> : vector<8x128xf32>
    %299 = tpu.matmul %255, %0, %cst_96 {dimension_numbers = #tpu.dot_dimension_numbers<[1], [0], [0], [1], [0, 0, 1, 1], [], []>} : vector<8x128xf32>, vector<128x128xf32>, vector<8x128xf32> -> vector<8x128xf32>
    %300 = arith.mulf %299, %295 : vector<8x128xf32>
    %cst_97 = arith.constant dense<0.000000e+00> : vector<8xf32>
    %301 = vector.multi_reduction <add>, %300, %cst_97 [1] : vector<8x128xf32> to vector<8xf32>
    %302 = vector.shape_cast %301 : vector<8xf32> to vector<8x1xf32>
    %303 = arith.addf %298, %302 : vector<8x1xf32>
    %304 = arith.mulf %303, %271 : vector<8x1xf32>
    %305 = arith.addf %265, %304 : vector<8x1xf32>
    %c7_i32_98 = arith.constant 7 : i32
    %cst_99 = arith.constant dense<0xFF800000> : vector<8xf32>
    %306 = vector.multi_reduction <maximumf>, %291, %cst_99 [1] : vector<8x128xf32> to vector<8xf32>
    %307 = vector.shape_cast %306 : vector<8xf32> to vector<8x1xf32>
    %308 = vector.broadcast %307 : vector<8x1xf32> to vector<8x128xf32>
    %309 = arith.subf %291, %308 : vector<8x128xf32>
    %310 = math.exp %309 : vector<8x128xf32>
    %cst_100 = arith.constant dense<0.000000e+00> : vector<8xf32>
    %311 = vector.multi_reduction <add>, %310, %cst_100 [1] : vector<8x128xf32> to vector<8xf32>
    %312 = vector.shape_cast %311 : vector<8xf32> to vector<8x1xf32>
    %313 = math.log %312 : vector<8x1xf32>
    %314 = arith.addf %313, %307 : vector<8x1xf32>
    %315 = arith.subf %314, %305 : vector<8x1xf32>
    %316 = vector.shape_cast %315 : vector<8x1xf32> to vector<8x1xf32>
    %317 = vector.broadcast %316 : vector<8x1xf32> to vector<8x128xf32>
    %c0_101 = arith.constant 0 : index
    %c0_102 = arith.constant 0 : index
    %318 = vector.load %arg5[%c0_101, %c0_102] : memref<8x128xf32, #tpu.memory_space<vmem>>, vector<8x128xf32>
    tpu.vector_store %arg5[%c0_101, %c0_102], %317 {strides = array<i32>} : memref<8x128xf32, #tpu.memory_space<vmem>>, vector<8x128xf32>,
    return
  }
  func.func @transform_0(%arg0: i32) -> (i32, i32, i32) {
    %c0_i32 = arith.constant 0 : i32
    %c0_i32_0 = arith.constant 0 : i32
    %c0_i32_1 = arith.constant 0 : i32
    return %c0_i32, %arg0, %c0_i32_0 : i32, i32, i32
  }
  func.func @transform_1(%arg0: i32) -> (i32, i32, i32) {
    %c0_i32 = arith.constant 0 : i32
    %c0_i32_0 = arith.constant 0 : i32
    %c0_i32_1 = arith.constant 0 : i32
    return %c0_i32, %arg0, %c0_i32_0 : i32, i32, i32
  }
  func.func @transform_2(%arg0: i32) -> (i32, i32, i32) {
    %c0_i32 = arith.constant 0 : i32
    %c0_i32_0 = arith.constant 0 : i32
    %c0_i32_1 = arith.constant 0 : i32
    return %c0_i32, %arg0, %c0_i32_0 : i32, i32, i32
  }
  func.func @transform_3(%arg0: i32) -> (i32, i32) {
    %c0_i32 = arith.constant 0 : i32
    %c0_i32_0 = arith.constant 0 : i32
    %c0_i32_1 = arith.constant 0 : i32
    return %c0_i32, %c0_i32_0 : i32, i32
  }
  func.func @transform_4(%arg0: i32) -> (i32, i32) {
    %c0_i32 = arith.constant 0 : i32
    %c0_i32_0 = arith.constant 0 : i32
    return %arg0, %c0_i32 : i32, i32
  }
}

</mosaic_0001>

<llo_original>
// kernel: tpu_custom_call.1
$region0: #{tpu_custom_call.1}
  #allocation0 [shape = 'u32[]', space=smem, size = 0x4, offset = 0x4, fixed_abs, tag = 'smem constant byte address 0x4 - core index']
  #allocation1 [shape = 'u32[144,128]{1,0:T(1,128)}', space=vmem, size = 0x12000, scoped, tag = 'internal scratch']
  %s0 = inlined_call_operand.hbm [shape: f32[8,8,128], index: 0, kind: input, shape index: {}]
  %s1 = inlined_call_operand.vmem [shape: s32[8,8,1], index: 1, kind: input, shape index: {}]
  %s2 = inlined_call_operand.vmem [shape: f32[8,8,1], index: 2, kind: input, shape index: {}]
  %s3 = inlined_call_operand.vmem [shape: f32[128,128], index: 3, kind: input, shape index: {}]
  %s4 = inlined_call_operand.hbm [shape: f32[8,128], index: 4, kind: output, shape index: {}]
  %s5 = sld [smem:[#allocation0]]
  $region30: #{tpu_custom_call.1} parent=0
    _
  %s7 = ssub.s32 1, %s5
  %s8 = scalar_select 0, %s7, %s5
  $region1: #{tpu_custom_call.1} parent=0
    #allocation2 [shape = 'u8[32768]{0}', space=vmem, size = 0x8000, scoped, tag = 'input window, operand 0, single buffered']
    #allocation3 [shape = 's32[1]{0}', space=sflag, size = 0x4, scoped, tag = 'scoped memory for tpu_custom_call.1']
    #allocation4 [shape = 's32[1]{0}', space=sflag, size = 0x4, scoped, tag = 'scoped memory for tpu_custom_call.1']
    #allocation5 [shape = 'u8[4096]{0}', space=vmem, size = 0x1000, scoped, tag = 'output window, operand 0, single buffered']
    %9 = vsyncpa [#allocation3], 0
    %10 = vsyncpa [#allocation4], 0
    // Predicated region
    $region2: #{tpu_custom_call.1} parent=1 // pred_check
      _
    $region3: #{tpu_custom_call.1} parent=1 // pred_check_branch
      %12 = sbr.rel (0) target = $region5
    $region4: #{tpu_custom_call.1} parent=1 // pred_region
      %s14 = ssub.s32 1024, 1024
      %15 = vsyncadd [#allocation3], %s14
      %s16 = sshll.u32 [#allocation2], 4
      %s17 = int_to_ptr.vmem [resolvable:$true] %s16
      %22 = dma.hbm_to_vmem [thread:$0]  %s0, 1024, %s17, [#allocation3], 128, 128, 8
    $region5: #{tpu_custom_call.1} parent=1 // pred_fallthru
      _
    // Predicated region
    $region6: #{tpu_custom_call.1} parent=1 // pred_check
      _
    $region7: #{tpu_custom_call.1} parent=1 // pred_check_branch
      %24 = sbr.rel (0) target = $region9
    $region8: #{tpu_custom_call.1} parent=1 // pred_region
      _
    $region9: #{tpu_custom_call.1} parent=1 // pred_fallthru
      _
    // Predicated region
    $region10: #{tpu_custom_call.1} parent=1 // pred_check
      _
    $region11: #{tpu_custom_call.1} parent=1 // pred_check_branch
      %26 = sbr.rel (0) target = $region13
    $region12: #{tpu_custom_call.1} parent=1 // pred_region
      _
    $region13: #{tpu_custom_call.1} parent=1 // pred_fallthru
      _
    // Predicated region
    $region14: #{tpu_custom_call.1} parent=1 // pred_check
      _
    $region15: #{tpu_custom_call.1} parent=1 // pred_check_branch
      %28 = sbr.rel (0) target = $region17
    $region16: #{tpu_custom_call.1} parent=1 // pred_region
      _
    $region17: #{tpu_custom_call.1} parent=1 // pred_fallthru
      _
    // Predicated region
    $region18: #{tpu_custom_call.1} parent=1 // pred_check
      _
    $region19: #{tpu_custom_call.1} parent=1 // pred_check_branch
      %30 = sbr.rel (0) target = $region21
    $region20: #{tpu_custom_call.1} parent=1 // pred_region
      %31 = dma.done [#allocation3], 1024
    $region21: #{tpu_custom_call.1} parent=1 // pred_fallthru
      _
    %v32 = vld [vmem:[%s3] sm:$0xff]
    %v33 = vld [vmem:[%s3 + $0x8] sm:$0xff]
    %v34 = vld [vmem:[%s3 + $0x10] sm:$0xff]
    %v35 = vld [vmem:[%s3 + $0x18] sm:$0xff]
    %v36 = vld [vmem:[%s3 + $0x20] sm:$0xff]
    %v37 = vld [vmem:[%s3 + $0x28] sm:$0xff]
    %v38 = vld [vmem:[%s3 + $0x30] sm:$0xff]
    %v39 = vld [vmem:[%s3 + $0x38] sm:$0xff]
    %v40 = vld [vmem:[%s3 + $0x40] sm:$0xff]
    %v41 = vld [vmem:[%s3 + $0x48] sm:$0xff]
    %v42 = vld [vmem:[%s3 + $0x50] sm:$0xff]
    %v43 = vld [vmem:[%s3 + $0x58] sm:$0xff]
    %v44 = vld [vmem:[%s3 + $0x60] sm:$0xff]
    %v45 = vld [vmem:[%s3 + $0x68] sm:$0xff]
    %v46 = vld [vmem:[%s3 + $0x70] sm:$0xff]
    %v47 = vld [vmem:[%s3 + $0x78] sm:$0xff]
    %v48 = vmax.f32 %v32, %v36
    %v49 = vmax.f32 %v33, %v37
    %v50 = vmax.f32 %v34, %v38
    %v51 = vmax.f32 %v35, %v39
    %v52 = vmax.f32 %v48, %v40
    %v53 = vmax.f32 %v49, %v41
    %v54 = vmax.f32 %v50, %v42
    %v55 = vmax.f32 %v51, %v43
    %v56 = vmax.f32 %v52, %v44
    %v57 = vmax.f32 %v53, %v45
    %v58 = vmax.f32 %v54, %v46
    %v59 = vmax.f32 %v55, %v47
    %v60 = vmax.f32 %v56, %v57
    %v61 = vmax.f32 %v58, %v59
    %v62 = vmax.f32 %v60, %v61
    %63 = vmax.xlane.f32.xlu0 %v62
    %v64 = vpop.xlane.xlu0 %63
    %v65 = vrot.slane %v64, 4
    %v66 = vmax.f32 %v64, %v65
    %v67 = vrot.slane %v66, 2
    %v68 = vmax.f32 %v66, %v67
    %v69 = vrot.slane %v68, 1
    %v70 = vmax.f32 %v68, %v69
    %s71 = vtos %v70
    %v72 = vstv %s71
    %v73 = vsub.f32 %v32, %v72
    %v74 = vsub.f32 %v33, %v72
    %v75 = vsub.f32 %v34, %v72
    %v76 = vsub.f32 %v35, %v72
    %v77 = vsub.f32 %v36, %v72
    %v78 = vsub.f32 %v37, %v72
    %v79 = vsub.f32 %v38, %v72
    %v80 = vsub.f32 %v39, %v72
    %v81 = vsub.f32 %v40, %v72
    %v82 = vsub.f32 %v41, %v72
    %v83 = vsub.f32 %v42, %v72
    %v84 = vsub.f32 %v43, %v72
    %v85 = vsub.f32 %v44, %v72
    %v86 = vsub.f32 %v45, %v72
    %v87 = vsub.f32 %v46, %v72
    %v88 = vsub.f32 %v47, %v72
    %v89 = vmul.f32 %v73, 1.442695
    %v90 = vpow.pop %v89
    %v91 = vmul.f32 %v74, 1.442695
    %v92 = vpow.pop %v91
    %v93 = vmul.f32 %v75, 1.442695
    %v94 = vpow.pop %v93
    %v95 = vmul.f32 %v76, 1.442695
    %v96 = vpow.pop %v95
    %v97 = vmul.f32 %v77, 1.442695
    %v98 = vpow.pop %v97
    %v99 = vmul.f32 %v78, 1.442695
    %v100 = vpow.pop %v99
    %v101 = vmul.f32 %v79, 1.442695
    %v102 = vpow.pop %v101
    %v103 = vmul.f32 %v80, 1.442695
    %v104 = vpow.pop %v103
    %v105 = vmul.f32 %v81, 1.442695
    %v106 = vpow.pop %v105
    %v107 = vmul.f32 %v82, 1.442695
    %v108 = vpow.pop %v107
    %v109 = vmul.f32 %v83, 1.442695
    %v110 = vpow.pop %v109
    %v111 = vmul.f32 %v84, 1.442695
    %v112 = vpow.pop %v111
    %v113 = vmul.f32 %v85, 1.442695
    %v114 = vpow.pop %v113
    %v115 = vmul.f32 %v86, 1.442695
    %v116 = vpow.pop %v115
    %v117 = vmul.f32 %v87, 1.442695
    %v118 = vpow.pop %v117
    %v119 = vmul.f32 %v88, 1.442695
    %v120 = vpow.pop %v119
    %v121 = vlaneseq
    %v122 = vand.u32 %v121, 127
    %v123 = vld [vmem:[#allocation2] sm:$0xff]
    %v124 = vld [vmem:[%s1] sm:$0xff]
    %125 = vset.pattern.permute.xlu0 0
    %126 = vperm.xlu0 %125, %v124
    %v127 = vpop.permute.xlu0 %126
    %vm128 = vcmp.eq.s32.totalorder %v122, %v127
    %v129 = vsel %vm128, 1, 0
    %v130 = vcvt.s32.f32 %v129
    %v131 = vmul.f32 %v123, %v130
    %132 = vadd.xlane.f32.xlu0 %v131
    %v133 = vpop.xlane.xlu0 %132
    %v134 = vld [vmem:[%s2] sm:$0xff]
    %v135 = vmul.f32 %v133, %v134
    %s136 = scalar_lea.vmem [#allocation2], 8
    %v137 = vld [vmem:[%s136] sm:$0xff]
    %s138 = scalar_lea.vmem %s2, 8
    %v139 = vld [vmem:[%s138] sm:$0xff]
    %s140 = scalar_lea.vmem %s1, 8
    %v141 = vld [vmem:[%s140] sm:$0xff]
    %142 = vmax.xlane.f32.xlu0 %v123
    %v143 = vpop.xlane.xlu0 %142
    %v144 = vsub.f32 %v123, %v143
    %v145 = vmul.f32 %v144, 1.442695
    %v146 = vpow.pop %v145
    %147 = vmatprep.subr.mxu0 0.0
    %148 = vmatpush1.msra.mxu0 %v90
    %149 = vmatprep.subr.mxu0 0.0
    %150 = vmatpush1.msra.mxu0 %v92
    %151 = vmatprep.subr.mxu0 0.0
    %152 = vmatpush1.msra.mxu0 %v94
    %153 = vmatprep.subr.mxu0 0.0
    %154 = vmatpush1.msra.mxu0 %v96
    %155 = vmatprep.subr.mxu0 0.0
    %156 = vmatpush1.msra.mxu0 %v98
    %157 = vmatprep.subr.mxu0 0.0
    %158 = vmatpush1.msra.mxu0 %v100
    %159 = vmatprep.subr.mxu0 0.0
    %160 = vmatpush1.msra.mxu0 %v102
    %161 = vmatprep.subr.mxu0 0.0
    %162 = vmatpush1.msra.mxu0 %v104
    %163 = vmatprep.subr.mxu0 0.0
    %164 = vmatpush1.msra.mxu0 %v106
    %165 = vmatprep.subr.mxu0 0.0
    %166 = vmatpush1.msra.mxu0 %v108
    %167 = vmatprep.subr.mxu0 0.0
    %168 = vmatpush1.msra.mxu0 %v110
    %169 = vmatprep.subr.mxu0 0.0
    %170 = vmatpush1.msra.mxu0 %v112
    %171 = vmatprep.subr.mxu0 0.0
    %172 = vmatpush1.msra.mxu0 %v114
    %173 = vmatprep.subr.mxu0 0.0
    %174 = vmatpush1.msra.mxu0 %v116
    %175 = vmatprep.subr.mxu0 0.0
    %176 = vmatpush1.msra.mxu0 %v118
    %177 = vmatprep.subr.mxu0 0.0
    %178 = vmatpush1.msra.mxu0 %v120
    %179 = vmatprep.subr.mxu0 0.0
    %180 = vmatpush1.msra.mxu0 0.0
    %181 = vmatprep.subr.mxu0 0.0
    %182 = vmatpush1.msra.mxu0 0.0
    %183 = vmatprep.subr.mxu0 0.0
    %184 = vmatpush1.msra.mxu0 0.0
    %185 = vmatprep.subr.mxu0 0.0
    %186 = vmatpush1.msra.mxu0 0.0
    %187 = vmatprep.subr.mxu0 0.0
    %188 = vmatpush1.msra.mxu0 0.0
    %189 = vmatprep.subr.mxu0 0.0
    %190 = vmatpush1.msra.mxu0 0.0
    %191 = vmatprep.subr.mxu0 0.0
    %192 = vmatpush1.msra.mxu0 0.0
    %193 = vmatprep.subr.mxu0 0.0
    %194 = vmatpush1.msra.mxu0 0.0
    %195 = vmatprep.subr.mxu0 0.0
    %196 = vmatpush1.msra.mxu0 0.0
    %197 = vmatprep.subr.mxu0 0.0
    %198 = vmatpush1.msra.mxu0 0.0
    %199 = vmatprep.subr.mxu0 0.0
    %200 = vmatpush1.msra.mxu0 0.0
    %201 = vmatprep.subr.mxu0 0.0
    %202 = vmatpush1.msra.mxu0 0.0
    %203 = vmatprep.subr.mxu0 0.0
    %204 = vmatpush1.msra.mxu0 0.0
    %205 = vmatprep.subr.mxu0 0.0
    %206 = vmatpush1.msra.mxu0 0.0
    %207 = vmatprep.subr.mxu0 0.0
    %208 = vmatpush1.msra.mxu0 0.0
    %209 = vmatprep.subr.mxu0 0.0
    %210 = vmatpush1.msra.mxu0 0.0
    %211 = vmatprep.mubr.f32.mxu0 0.0
    %212 = vmatmul.mubr.f32.gmra.mrb[0].mxu0 %v146
    %v213 = vpop.f32.mrb[0].mxu0
    %v214 = vadd.f32 0.0, %v213
    %v215 = vpop.f32.mrb[0].mxu0
    %216 = vdwg.mxu0
    %v217 = vlog2.pop %v214
    %v218 = vmul.f32 %v217, 0.6931472
    %v219 = vadd.f32 %v218, %v143
    %v220 = vadd.f32 %v219, %v72
    %v221 = vadd.f32 %v220, %v137
    %vm222 = vcmp.gt.f32.partialorder %v139, 0.5
    %v223 = vsel %vm222, 1, 0
    %224 = vset.pattern.permute.xlu0 0
    %225 = vperm.xlu0 %224, %v223
    %v226 = vpop.permute.xlu0 %225
    %vm227 = vcmp.eq.s32.totalorder %v226, 1
    %v228 = vsel %vm227, %v221, %v123
    %229 = vset.pattern.permute.xlu0 0
    %230 = vperm.xlu0 %229, %v141
    %v231 = vpop.permute.xlu0 %230
    %vm232 = vcmp.eq.s32.totalorder %v122, %v231
    %v233 = vsel %vm232, 1, 0
    %v234 = vcvt.s32.f32 %v233
    %v235 = vmul.f32 %v137, %v234
    %236 = vadd.xlane.f32.xlu0 %v235
    %v237 = vpop.xlane.xlu0 %236
    %238 = vmatprep.subr.mxu0 0.0
    %239 = vmatpush1.msra.mxu0 %v32
    %240 = vmatprep.subr.mxu0 0.0
    %241 = vmatpush1.msra.mxu0 %v33
    %242 = vmatprep.subr.mxu0 0.0
    %243 = vmatpush1.msra.mxu0 %v34
    %244 = vmatprep.subr.mxu0 0.0
    %245 = vmatpush1.msra.mxu0 %v35
    %246 = vmatprep.subr.mxu0 0.0
    %247 = vmatpush1.msra.mxu0 %v36
    %248 = vmatprep.subr.mxu0 0.0
    %249 = vmatpush1.msra.mxu0 %v37
    %250 = vmatprep.subr.mxu0 0.0
    %251 = vmatpush1.msra.mxu0 %v38
    %252 = vmatprep.subr.mxu0 0.0
    %253 = vmatpush1.msra.mxu0 %v39
    %254 = vmatprep.subr.mxu0 0.0
    %255 = vmatpush1.msra.mxu0 %v40
    %256 = vmatprep.subr.mxu0 0.0
    %257 = vmatpush1.msra.mxu0 %v41
    %258 = vmatprep.subr.mxu0 0.0
    %259 = vmatpush1.msra.mxu0 %v42
    %260 = vmatprep.subr.mxu0 0.0
    %261 = vmatpush1.msra.mxu0 %v43
    %262 = vmatprep.subr.mxu0 0.0
    %263 = vmatpush1.msra.mxu0 %v44
    %264 = vmatprep.subr.mxu0 0.0
    %265 = vmatpush1.msra.mxu0 %v45
    %266 = vmatprep.subr.mxu0 0.0
    %267 = vmatpush1.msra.mxu0 %v46
    %268 = vmatprep.subr.mxu0 0.0
    %269 = vmatpush1.msra.mxu0 %v47
    %270 = vmatprep.subr.mxu0 0.0
    %271 = vmatpush1.msra.mxu0 0.0
    %272 = vmatprep.subr.mxu0 0.0
    %273 = vmatpush1.msra.mxu0 0.0
    %274 = vmatprep.subr.mxu0 0.0
    %275 = vmatpush1.msra.mxu0 0.0
    %276 = vmatprep.subr.mxu0 0.0
    %277 = vmatpush1.msra.mxu0 0.0
    %278 = vmatprep.subr.mxu0 0.0
    %279 = vmatpush1.msra.mxu0 0.0
    %280 = vmatprep.subr.mxu0 0.0
    %281 = vmatpush1.msra.mxu0 0.0
    %282 = vmatprep.subr.mxu0 0.0
    %283 = vmatpush1.msra.mxu0 0.0
    %284 = vmatprep.subr.mxu0 0.0
    %285 = vmatpush1.msra.mxu0 0.0
    %286 = vmatprep.subr.mxu0 0.0
    %287 = vmatpush1.msra.mxu0 0.0
    %288 = vmatprep.subr.mxu0 0.0
    %289 = vmatpush1.msra.mxu0 0.0
    %290 = vmatprep.subr.mxu0 0.0
    %291 = vmatpush1.msra.mxu0 0.0
    %292 = vmatprep.subr.mxu0 0.0
    %293 = vmatpush1.msra.mxu0 0.0
    %294 = vmatprep.subr.mxu0 0.0
    %295 = vmatpush1.msra.mxu0 0.0
    %296 = vmatprep.subr.mxu0 0.0
    %297 = vmatpush1.msra.mxu0 0.0
    %298 = vmatprep.subr.mxu0 0.0
    %299 = vmatpush1.msra.mxu0 0.0
    %300 = vmatprep.subr.mxu0 0.0
    %301 = vmatpush1.msra.mxu0 0.0
    %302 = vmatprep.mubr.f32.mxu0 0.0
    %303 = vmatmul.mubr.f32.gmra.mrb[0].mxu0 %v130
    %v304 = vpop.f32.mrb[0].mxu0
    %v305 = vadd.f32 0.0, %v304
    %v306 = vpop.f32.mrb[0].mxu0
    %307 = vdwg.mxu0
    %v308 = vmul.f32 %v305, %v234
    %309 = vadd.xlane.f32.xlu0 %v308
    %v310 = vpop.xlane.xlu0 %309
    %v311 = vadd.f32 %v237, %v310
    %v312 = vmul.f32 %v311, %v139
    %v313 = vadd.f32 %v135, %v312
    %s314 = scalar_lea.vmem [#allocation2], 16
    %v315 = vld [vmem:[%s314] sm:$0xff]
    %s316 = scalar_lea.vmem %s2, 16
    %v317 = vld [vmem:[%s316] sm:$0xff]
    %s318 = scalar_lea.vmem %s1, 16
    %v319 = vld [vmem:[%s318] sm:$0xff]
    %320 = vmax.xlane.f32.xlu0 %v228
    %v321 = vpop.xlane.xlu0 %320
    %v322 = vsub.f32 %v228, %v321
    %v323 = vmul.f32 %v322, 1.442695
    %v324 = vpow.pop %v323
    %325 = vmatprep.subr.mxu0 0.0
    %326 = vmatpush1.msra.mxu0 %v90
    %327 = vmatprep.subr.mxu0 0.0
    %328 = vmatpush1.msra.mxu0 %v92
    %329 = vmatprep.subr.mxu0 0.0
    %330 = vmatpush1.msra.mxu0 %v94
    %331 = vmatprep.subr.mxu0 0.0
    %332 = vmatpush1.msra.mxu0 %v96
    %333 = vmatprep.subr.mxu0 0.0
    %334 = vmatpush1.msra.mxu0 %v98
    %335 = vmatprep.subr.mxu0 0.0
    %336 = vmatpush1.msra.mxu0 %v100
    %337 = vmatprep.subr.mxu0 0.0
    %338 = vmatpush1.msra.mxu0 %v102
    %339 = vmatprep.subr.mxu0 0.0
    %340 = vmatpush1.msra.mxu0 %v104
    %341 = vmatprep.subr.mxu0 0.0
    %342 = vmatpush1.msra.mxu0 %v106
    %343 = vmatprep.subr.mxu0 0.0
    %344 = vmatpush1.msra.mxu0 %v108
    %345 = vmatprep.subr.mxu0 0.0
    %346 = vmatpush1.msra.mxu0 %v110
    %347 = vmatprep.subr.mxu0 0.0
    %348 = vmatpush1.msra.mxu0 %v112
    %349 = vmatprep.subr.mxu0 0.0
    %350 = vmatpush1.msra.mxu0 %v114
    %351 = vmatprep.subr.mxu0 0.0
    %352 = vmatpush1.msra.mxu0 %v116
    %353 = vmatprep.subr.mxu0 0.0
    %354 = vmatpush1.msra.mxu0 %v118
    %355 = vmatprep.subr.mxu0 0.0
    %356 = vmatpush1.msra.mxu0 %v120
    %357 = vmatprep.subr.mxu0 0.0
    %358 = vmatpush1.msra.mxu0 0.0
    %359 = vmatprep.subr.mxu0 0.0
    %360 = vmatpush1.msra.mxu0 0.0
    %361 = vmatprep.subr.mxu0 0.0
    %362 = vmatpush1.msra.mxu0 0.0
    %363 = vmatprep.subr.mxu0 0.0
    %364 = vmatpush1.msra.mxu0 0.0
    %365 = vmatprep.subr.mxu0 0.0
    %366 = vmatpush1.msra.mxu0 0.0
    %367 = vmatprep.subr.mxu0 0.0
    %368 = vmatpush1.msra.mxu0 0.0
    %369 = vmatprep.subr.mxu0 0.0
    %370 = vmatpush1.msra.mxu0 0.0
    %371 = vmatprep.subr.mxu0 0.0
    %372 = vmatpush1.msra.mxu0 0.0
    %373 = vmatprep.subr.mxu0 0.0
    %374 = vmatpush1.msra.mxu0 0.0
    %375 = vmatprep.subr.mxu0 0.0
    %376 = vmatpush1.msra.mxu0 0.0
    %377 = vmatprep.subr.mxu0 0.0
    %378 = vmatpush1.msra.mxu0 0.0
    %379 = vmatprep.subr.mxu0 0.0
    %380 = vmatpush1.msra.mxu0 0.0
    %381 = vmatprep.subr.mxu0 0.0
    %382 = vmatpush1.msra.mxu0 0.0
    %383 = vmatprep.subr.mxu0 0.0
    %384 = vmatpush1.msra.mxu0 0.0
    %385 = vmatprep.subr.mxu0 0.0
    %386 = vmatpush1.msra.mxu0 0.0
    %387 = vmatprep.subr.mxu0 0.0
    %388 = vmatpush1.msra.mxu0 0.0
    %389 = vmatprep.mubr.f32.mxu0 0.0
    %390 = vmatmul.mubr.f32.gmra.mrb[0].mxu0 %v324
    %v391 = vpop.f32.mrb[0].mxu0
    %v392 = vadd.f32 0.0, %v391
    %v393 = vpop.f32.mrb[0].mxu0
    %394 = vdwg.mxu0
    %v395 = vlog2.pop %v392
    %v396 = vmul.f32 %v395, 0.6931472
    %v397 = vadd.f32 %v396, %v321
    %v398 = vadd.f32 %v397, %v72
    %v399 = vadd.f32 %v398, %v315
    %vm400 = vcmp.gt.f32.partialorder %v317, 0.5
    %v401 = vsel %vm400, 1, 0
    %402 = vset.pattern.permute.xlu0 0
    %403 = vperm.xlu0 %402, %v401
    %v404 = vpop.permute.xlu0 %403
    %vm405 = vcmp.eq.s32.totalorder %v404, 1
    %v406 = vsel %vm405, %v399, %v228
    %407 = vset.pattern.permute.xlu0 0
    %408 = vperm.xlu0 %407, %v319
    %v409 = vpop.permute.xlu0 %408
    %vm410 = vcmp.eq.s32.totalorder %v122, %v409
    %v411 = vsel %vm410, 1, 0
    %v412 = vcvt.s32.f32 %v411
    %v413 = vmul.f32 %v315, %v412
    %414 = vadd.xlane.f32.xlu0 %v413
    %v415 = vpop.xlane.xlu0 %414
    %416 = vmatprep.subr.mxu0 0.0
    %417 = vmatpush1.msra.mxu0 %v32
    %418 = vmatprep.subr.mxu0 0.0
    %419 = vmatpush1.msra.mxu0 %v33
    %420 = vmatprep.subr.mxu0 0.0
    %421 = vmatpush1.msra.mxu0 %v34
    %422 = vmatprep.subr.mxu0 0.0
    %423 = vmatpush1.msra.mxu0 %v35
    %424 = vmatprep.subr.mxu0 0.0
    %425 = vmatpush1.msra.mxu0 %v36
    %426 = vmatprep.subr.mxu0 0.0
    %427 = vmatpush1.msra.mxu0 %v37
    %428 = vmatprep.subr.mxu0 0.0
    %429 = vmatpush1.msra.mxu0 %v38
    %430 = vmatprep.subr.mxu0 0.0
    %431 = vmatpush1.msra.mxu0 %v39
    %432 = vmatprep.subr.mxu0 0.0
    %433 = vmatpush1.msra.mxu0 %v40
    %434 = vmatprep.subr.mxu0 0.0
    %435 = vmatpush1.msra.mxu0 %v41
    %436 = vmatprep.subr.mxu0 0.0
    %437 = vmatpush1.msra.mxu0 %v42
    %438 = vmatprep.subr.mxu0 0.0
    %439 = vmatpush1.msra.mxu0 %v43
    %440 = vmatprep.subr.mxu0 0.0
    %441 = vmatpush1.msra.mxu0 %v44
    %442 = vmatprep.subr.mxu0 0.0
    %443 = vmatpush1.msra.mxu0 %v45
    %444 = vmatprep.subr.mxu0 0.0
    %445 = vmatpush1.msra.mxu0 %v46
    %446 = vmatprep.subr.mxu0 0.0
    %447 = vmatpush1.msra.mxu0 %v47
    %448 = vmatprep.subr.mxu0 0.0
    %449 = vmatpush1.msra.mxu0 0.0
    %450 = vmatprep.subr.mxu0 0.0
    %451 = vmatpush1.msra.mxu0 0.0
    %452 = vmatprep.subr.mxu0 0.0
    %453 = vmatpush1.msra.mxu0 0.0
    %454 = vmatprep.subr.mxu0 0.0
    %455 = vmatpush1.msra.mxu0 0.0
    %456 = vmatprep.subr.mxu0 0.0
    %457 = vmatpush1.msra.mxu0 0.0
    %458 = vmatprep.subr.mxu0 0.0
    %459 = vmatpush1.msra.mxu0 0.0
    %460 = vmatprep.subr.mxu0 0.0
    %461 = vmatpush1.msra.mxu0 0.0
    %462 = vmatprep.subr.mxu0 0.0
    %463 = vmatpush1.msra.mxu0 0.0
    %464 = vmatprep.subr.mxu0 0.0
    %465 = vmatpush1.msra.mxu0 0.0
    %466 = vmatprep.subr.mxu0 0.0
    %467 = vmatpush1.msra.mxu0 0.0
    %468 = vmatprep.subr.mxu0 0.0
    %469 = vmatpush1.msra.mxu0 0.0
    %470 = vmatprep.subr.mxu0 0.0
    %471 = vmatpush1.msra.mxu0 0.0
    %472 = vmatprep.subr.mxu0 0.0
    %473 = vmatpush1.msra.mxu0 0.0
    %474 = vmatprep.subr.mxu0 0.0
    %475 = vmatpush1.msra.mxu0 0.0
    %476 = vmatprep.subr.mxu0 0.0
    %477 = vmatpush1.msra.mxu0 0.0
    %478 = vmatprep.subr.mxu0 0.0
    %479 = vmatpush1.msra.mxu0 0.0
    %480 = vmatprep.mubr.f32.mxu0 0.0
    %481 = vmatmul.mubr.f32.gmra.mrb[0].mxu0 %v234
    %v482 = vpop.f32.mrb[0].mxu0
    %v483 = vadd.f32 0.0, %v482
    %v484 = vpop.f32.mrb[0].mxu0
    %485 = vdwg.mxu0
    %v486 = vmul.f32 %v483, %v412
    %487 = vadd.xlane.f32.xlu0 %v486
    %v488 = vpop.xlane.xlu0 %487
    %v489 = vadd.f32 %v415, %v488
    %v490 = vmul.f32 %v489, %v317
    %v491 = vadd.f32 %v313, %v490
    %s492 = scalar_lea.vmem [#allocation2], 24
    %v493 = vld [vmem:[%s492] sm:$0xff]
    %s494 = scalar_lea.vmem %s2, 24
    %v495 = vld [vmem:[%s494] sm:$0xff]
    %s496 = scalar_lea.vmem %s1, 24
    %v497 = vld [vmem:[%s496] sm:$0xff]
    %498 = vmax.xlane.f32.xlu0 %v406
    %v499 = vpop.xlane.xlu0 %498
    %v500 = vsub.f32 %v406, %v499
    %v501 = vmul.f32 %v500, 1.442695
    %v502 = vpow.pop %v501
    %503 = vmatprep.subr.mxu0 0.0
    %504 = vmatpush1.msra.mxu0 %v90
    %505 = vmatprep.subr.mxu0 0.0
    %506 = vmatpush1.msra.mxu0 %v92
    %507 = vmatprep.subr.mxu0 0.0
    %508 = vmatpush1.msra.mxu0 %v94
    %509 = vmatprep.subr.mxu0 0.0
    %510 = vmatpush1.msra.mxu0 %v96
    %511 = vmatprep.subr.mxu0 0.0
    %512 = vmatpush1.msra.mxu0 %v98
    %513 = vmatprep.subr.mxu0 0.0
    %514 = vmatpush1.msra.mxu0 %v100
    %515 = vmatprep.subr.mxu0 0.0
    %516 = vmatpush1.msra.mxu0 %v102
    %517 = vmatprep.subr.mxu0 0.0
    %518 = vmatpush1.msra.mxu0 %v104
    %519 = vmatprep.subr.mxu0 0.0
    %520 = vmatpush1.msra.mxu0 %v106
    %521 = vmatprep.subr.mxu0 0.0
    %522 = vmatpush1.msra.mxu0 %v108
    %523 = vmatprep.subr.mxu0 0.0
    %524 = vmatpush1.msra.mxu0 %v110
    %525 = vmatprep.subr.mxu0 0.0
    %526 = vmatpush1.msra.mxu0 %v112
    %527 = vmatprep.subr.mxu0 0.0
    %528 = vmatpush1.msra.mxu0 %v114
    %529 = vmatprep.subr.mxu0 0.0
    %530 = vmatpush1.msra.mxu0 %v116
    %531 = vmatprep.subr.mxu0 0.0
    %532 = vmatpush1.msra.mxu0 %v118
    %533 = vmatprep.subr.mxu0 0.0
    %534 = vmatpush1.msra.mxu0 %v120
    %535 = vmatprep.subr.mxu0 0.0
    %536 = vmatpush1.msra.mxu0 0.0
    %537 = vmatprep.subr.mxu0 0.0
    %538 = vmatpush1.msra.mxu0 0.0
    %539 = vmatprep.subr.mxu0 0.0
    %540 = vmatpush1.msra.mxu0 0.0
    %541 = vmatprep.subr.mxu0 0.0
    %542 = vmatpush1.msra.mxu0 0.0
    %543 = vmatprep.subr.mxu0 0.0
    %544 = vmatpush1.msra.mxu0 0.0
    %545 = vmatprep.subr.mxu0 0.0
    %546 = vmatpush1.msra.mxu0 0.0
    %547 = vmatprep.subr.mxu0 0.0
    %548 = vmatpush1.msra.mxu0 0.0
    %549 = vmatprep.subr.mxu0 0.0
    %550 = vmatpush1.msra.mxu0 0.0
    %551 = vmatprep.subr.mxu0 0.0
    %552 = vmatpush1.msra.mxu0 0.0
    %553 = vmatprep.subr.mxu0 0.0
    %554 = vmatpush1.msra.mxu0 0.0
    %555 = vmatprep.subr.mxu0 0.0
    %556 = vmatpush1.msra.mxu0 0.0
    %557 = vmatprep.subr.mxu0 0.0
    %558 = vmatpush1.msra.mxu0 0.0
    %559 = vmatprep.subr.mxu0 0.0
    %560 = vmatpush1.msra.mxu0 0.0
    %561 = vmatprep.subr.mxu0 0.0
    %562 = vmatpush1.msra.mxu0 0.0
    %563 = vmatprep.subr.mxu0 0.0
    %564 = vmatpush1.msra.mxu0 0.0
    %565 = vmatprep.subr.mxu0 0.0
    %566 = vmatpush1.msra.mxu0 0.0
    %567 = vmatprep.mubr.f32.mxu0 0.0
    %568 = vmatmul.mubr.f32.gmra.mrb[0].mxu0 %v502
    %v569 = vpop.f32.mrb[0].mxu0
    %v570 = vadd.f32 0.0, %v569
    %v571 = vpop.f32.mrb[0].mxu0
    %572 = vdwg.mxu0
    %v573 = vlog2.pop %v570
    %v574 = vmul.f32 %v573, 0.6931472
    %v575 = vadd.f32 %v574, %v499
    %v576 = vadd.f32 %v575, %v72
    %v577 = vadd.f32 %v576, %v493
    %vm578 = vcmp.gt.f32.partialorder %v495, 0.5
    %v579 = vsel %vm578, 1, 0
    %580 = vset.pattern.permute.xlu0 0
    %581 = vperm.xlu0 %580, %v579
    %v582 = vpop.permute.xlu0 %581
    %vm583 = vcmp.eq.s32.totalorder %v582, 1
    %v584 = vsel %vm583, %v577, %v406
    %585 = vset.pattern.permute.xlu0 0
    %586 = vperm.xlu0 %585, %v497
    %v587 = vpop.permute.xlu0 %586
    %vm588 = vcmp.eq.s32.totalorder %v122, %v587
    %v589 = vsel %vm588, 1, 0
    %v590 = vcvt.s32.f32 %v589
    %v591 = vmul.f32 %v493, %v590
    %592 = vadd.xlane.f32.xlu0 %v591
    %v593 = vpop.xlane.xlu0 %592
    %594 = vmatprep.subr.mxu0 0.0
    %595 = vmatpush1.msra.mxu0 %v32
    %596 = vmatprep.subr.mxu0 0.0
    %597 = vmatpush1.msra.mxu0 %v33
    %598 = vmatprep.subr.mxu0 0.0
    %599 = vmatpush1.msra.mxu0 %v34
    %600 = vmatprep.subr.mxu0 0.0
    %601 = vmatpush1.msra.mxu0 %v35
    %602 = vmatprep.subr.mxu0 0.0
    %603 = vmatpush1.msra.mxu0 %v36
    %604 = vmatprep.subr.mxu0 0.0
    %605 = vmatpush1.msra.mxu0 %v37
    %606 = vmatprep.subr.mxu0 0.0
    %607 = vmatpush1.msra.mxu0 %v38
    %608 = vmatprep.subr.mxu0 0.0
    %609 = vmatpush1.msra.mxu0 %v39
    %610 = vmatprep.subr.mxu0 0.0
    %611 = vmatpush1.msra.mxu0 %v40
    %612 = vmatprep.subr.mxu0 0.0
    %613 = vmatpush1.msra.mxu0 %v41
    %614 = vmatprep.subr.mxu0 0.0
    %615 = vmatpush1.msra.mxu0 %v42
    %616 = vmatprep.subr.mxu0 0.0
    %617 = vmatpush1.msra.mxu0 %v43
    %618 = vmatprep.subr.mxu0 0.0
    %619 = vmatpush1.msra.mxu0 %v44
    %620 = vmatprep.subr.mxu0 0.0
    %621 = vmatpush1.msra.mxu0 %v45
    %622 = vmatprep.subr.mxu0 0.0
    %623 = vmatpush1.msra.mxu0 %v46
    %624 = vmatprep.subr.mxu0 0.0
    %625 = vmatpush1.msra.mxu0 %v47
    %626 = vmatprep.subr.mxu0 0.0
    %627 = vmatpush1.msra.mxu0 0.0
    %628 = vmatprep.subr.mxu0 0.0
    %629 = vmatpush1.msra.mxu0 0.0
    %630 = vmatprep.subr.mxu0 0.0
    %631 = vmatpush1.msra.mxu0 0.0
    %632 = vmatprep.subr.mxu0 0.0
    %633 = vmatpush1.msra.mxu0 0.0
    %634 = vmatprep.subr.mxu0 0.0
    %635 = vmatpush1.msra.mxu0 0.0
    %636 = vmatprep.subr.mxu0 0.0
    %637 = vmatpush1.msra.mxu0 0.0
    %638 = vmatprep.subr.mxu0 0.0
    %639 = vmatpush1.msra.mxu0 0.0
    %640 = vmatprep.subr.mxu0 0.0
    %641 = vmatpush1.msra.mxu0 0.0
    %642 = vmatprep.subr.mxu0 0.0
    %643 = vmatpush1.msra.mxu0 0.0
    %644 = vmatprep.subr.mxu0 0.0
    %645 = vmatpush1.msra.mxu0 0.0
    %646 = vmatprep.subr.mxu0 0.0
    %647 = vmatpush1.msra.mxu0 0.0
    %648 = vmatprep.subr.mxu0 0.0
    %649 = vmatpush1.msra.mxu0 0.0
    %650 = vmatprep.subr.mxu0 0.0
    %651 = vmatpush1.msra.mxu0 0.0
    %652 = vmatprep.subr.mxu0 0.0
    %653 = vmatpush1.msra.mxu0 0.0
    %654 = vmatprep.subr.mxu0 0.0
    %655 = vmatpush1.msra.mxu0 0.0
    %656 = vmatprep.subr.mxu0 0.0
    %657 = vmatpush1.msra.mxu0 0.0
    %658 = vmatprep.mubr.f32.mxu0 0.0
    %659 = vmatmul.mubr.f32.gmra.mrb[0].mxu0 %v412
    %v660 = vpop.f32.mrb[0].mxu0
    %v661 = vadd.f32 0.0, %v660
    %v662 = vpop.f32.mrb[0].mxu0
    %663 = vdwg.mxu0
    %v664 = vmul.f32 %v661, %v590
    %665 = vadd.xlane.f32.xlu0 %v664
    %v666 = vpop.xlane.xlu0 %665
    %v667 = vadd.f32 %v593, %v666
    %v668 = vmul.f32 %v667, %v495
    %v669 = vadd.f32 %v491, %v668
    %s670 = scalar_lea.vmem [#allocation2], 32
    %v671 = vld [vmem:[%s670] sm:$0xff]
    %s672 = scalar_lea.vmem %s2, 32
    %v673 = vld [vmem:[%s672] sm:$0xff]
    %s674 = scalar_lea.vmem %s1, 32
    %v675 = vld [vmem:[%s674] sm:$0xff]
    %676 = vmax.xlane.f32.xlu0 %v584
    %v677 = vpop.xlane.xlu0 %676
    %v678 = vsub.f32 %v584, %v677
    %v679 = vmul.f32 %v678, 1.442695
    %v680 = vpow.pop %v679
    %681 = vmatprep.subr.mxu0 0.0
    %682 = vmatpush1.msra.mxu0 %v90
    %683 = vmatprep.subr.mxu0 0.0
    %684 = vmatpush1.msra.mxu0 %v92
    %685 = vmatprep.subr.mxu0 0.0
    %686 = vmatpush1.msra.mxu0 %v94
    %687 = vmatprep.subr.mxu0 0.0
    %688 = vmatpush1.msra.mxu0 %v96
    %689 = vmatprep.subr.mxu0 0.0
    %690 = vmatpush1.msra.mxu0 %v98
    %691 = vmatprep.subr.mxu0 0.0
    %692 = vmatpush1.msra.mxu0 %v100
    %693 = vmatprep.subr.mxu0 0.0
    %694 = vmatpush1.msra.mxu0 %v102
    %695 = vmatprep.subr.mxu0 0.0
    %696 = vmatpush1.msra.mxu0 %v104
    %697 = vmatprep.subr.mxu0 0.0
    %698 = vmatpush1.msra.mxu0 %v106
    %699 = vmatprep.subr.mxu0 0.0
    %700 = vmatpush1.msra.mxu0 %v108
    %701 = vmatprep.subr.mxu0 0.0
    %702 = vmatpush1.msra.mxu0 %v110
    %703 = vmatprep.subr.mxu0 0.0
    %704 = vmatpush1.msra.mxu0 %v112
    %705 = vmatprep.subr.mxu0 0.0
    %706 = vmatpush1.msra.mxu0 %v114
    %707 = vmatprep.subr.mxu0 0.0
    %708 = vmatpush1.msra.mxu0 %v116
    %709 = vmatprep.subr.mxu0 0.0
    %710 = vmatpush1.msra.mxu0 %v118
    %711 = vmatprep.subr.mxu0 0.0
    %712 = vmatpush1.msra.mxu0 %v120
    %713 = vmatprep.subr.mxu0 0.0
    %714 = vmatpush1.msra.mxu0 0.0
    %715 = vmatprep.subr.mxu0 0.0
    %716 = vmatpush1.msra.mxu0 0.0
    %717 = vmatprep.subr.mxu0 0.0
    %718 = vmatpush1.msra.mxu0 0.0
    %719 = vmatprep.subr.mxu0 0.0
    %720 = vmatpush1.msra.mxu0 0.0
    %721 = vmatprep.subr.mxu0 0.0
    %722 = vmatpush1.msra.mxu0 0.0
    %723 = vmatprep.subr.mxu0 0.0
    %724 = vmatpush1.msra.mxu0 0.0
    %725 = vmatprep.subr.mxu0 0.0
    %726 = vmatpush1.msra.mxu0 0.0
    %727 = vmatprep.subr.mxu0 0.0
    %728 = vmatpush1.msra.mxu0 0.0
    %729 = vmatprep.subr.mxu0 0.0
    %730 = vmatpush1.msra.mxu0 0.0
    %731 = vmatprep.subr.mxu0 0.0
    %732 = vmatpush1.msra.mxu0 0.0
    %733 = vmatprep.subr.mxu0 0.0
    %734 = vmatpush1.msra.mxu0 0.0
    %735 = vmatprep.subr.mxu0 0.0
    %736 = vmatpush1.msra.mxu0 0.0
    %737 = vmatprep.subr.mxu0 0.0
    %738 = vmatpush1.msra.mxu0 0.0
    %739 = vmatprep.subr.mxu0 0.0
    %740 = vmatpush1.msra.mxu0 0.0
    %741 = vmatprep.subr.mxu0 0.0
    %742 = vmatpush1.msra.mxu0 0.0
    %743 = vmatprep.subr.mxu0 0.0
    %744 = vmatpush1.msra.mxu0 0.0
    %745 = vmatprep.mubr.f32.mxu0 0.0
    %746 = vmatmul.mubr.f32.gmra.mrb[0].mxu0 %v680
    %v747 = vpop.f32.mrb[0].mxu0
    %v748 = vadd.f32 0.0, %v747
    %v749 = vpop.f32.mrb[0].mxu0
    %750 = vdwg.mxu0
    %v751 = vlog2.pop %v748
    %v752 = vmul.f32 %v751, 0.6931472
    %v753 = vadd.f32 %v752, %v677
    %v754 = vadd.f32 %v753, %v72
    %v755 = vadd.f32 %v754, %v671
    %vm756 = vcmp.gt.f32.partialorder %v673, 0.5
    %v757 = vsel %vm756, 1, 0
    %758 = vset.pattern.permute.xlu0 0
    %759 = vperm.xlu0 %758, %v757
    %v760 = vpop.permute.xlu0 %759
    %vm761 = vcmp.eq.s32.totalorder %v760, 1
    %v762 = vsel %vm761, %v755, %v584
    %763 = vset.pattern.permute.xlu0 0
    %764 = vperm.xlu0 %763, %v675
    %v765 = vpop.permute.xlu0 %764
    %vm766 = vcmp.eq.s32.totalorder %v122, %v765
    %v767 = vsel %vm766, 1, 0
    %v768 = vcvt.s32.f32 %v767
    %v769 = vmul.f32 %v671, %v768
    %770 = vadd.xlane.f32.xlu0 %v769
    %v771 = vpop.xlane.xlu0 %770
    %772 = vmatprep.subr.mxu0 0.0
    %773 = vmatpush1.msra.mxu0 %v32
    %774 = vmatprep.subr.mxu0 0.0
    %775 = vmatpush1.msra.mxu0 %v33
    %776 = vmatprep.subr.mxu0 0.0
    %777 = vmatpush1.msra.mxu0 %v34
    %778 = vmatprep.subr.mxu0 0.0
    %779 = vmatpush1.msra.mxu0 %v35
    %780 = vmatprep.subr.mxu0 0.0
    %781 = vmatpush1.msra.mxu0 %v36
    %782 = vmatprep.subr.mxu0 0.0
    %783 = vmatpush1.msra.mxu0 %v37
    %784 = vmatprep.subr.mxu0 0.0
    %785 = vmatpush1.msra.mxu0 %v38
    %786 = vmatprep.subr.mxu0 0.0
    %787 = vmatpush1.msra.mxu0 %v39
    %788 = vmatprep.subr.mxu0 0.0
    %789 = vmatpush1.msra.mxu0 %v40
    %790 = vmatprep.subr.mxu0 0.0
    %791 = vmatpush1.msra.mxu0 %v41
    %792 = vmatprep.subr.mxu0 0.0
    %793 = vmatpush1.msra.mxu0 %v42
    %794 = vmatprep.subr.mxu0 0.0
    %795 = vmatpush1.msra.mxu0 %v43
    %796 = vmatprep.subr.mxu0 0.0
    %797 = vmatpush1.msra.mxu0 %v44
    %798 = vmatprep.subr.mxu0 0.0
    %799 = vmatpush1.msra.mxu0 %v45
    %800 = vmatprep.subr.mxu0 0.0
    %801 = vmatpush1.msra.mxu0 %v46
    %802 = vmatprep.subr.mxu0 0.0
    %803 = vmatpush1.msra.mxu0 %v47
    %804 = vmatprep.subr.mxu0 0.0
    %805 = vmatpush1.msra.mxu0 0.0
    %806 = vmatprep.subr.mxu0 0.0
    %807 = vmatpush1.msra.mxu0 0.0
    %808 = vmatprep.subr.mxu0 0.0
    %809 = vmatpush1.msra.mxu0 0.0
    %810 = vmatprep.subr.mxu0 0.0
    %811 = vmatpush1.msra.mxu0 0.0
    %812 = vmatprep.subr.mxu0 0.0
    %813 = vmatpush1.msra.mxu0 0.0
    %814 = vmatprep.subr.mxu0 0.0
    %815 = vmatpush1.msra.mxu0 0.0
    %816 = vmatprep.subr.mxu0 0.0
    %817 = vmatpush1.msra.mxu0 0.0
    %818 = vmatprep.subr.mxu0 0.0
    %819 = vmatpush1.msra.mxu0 0.0
    %820 = vmatprep.subr.mxu0 0.0
    %821 = vmatpush1.msra.mxu0 0.0
    %822 = vmatprep.subr.mxu0 0.0
    %823 = vmatpush1.msra.mxu0 0.0
    %824 = vmatprep.subr.mxu0 0.0
    %825 = vmatpush1.msra.mxu0 0.0
    %826 = vmatprep.subr.mxu0 0.0
    %827 = vmatpush1.msra.mxu0 0.0
    %828 = vmatprep.subr.mxu0 0.0
    %829 = vmatpush1.msra.mxu0 0.0
    %830 = vmatprep.subr.mxu0 0.0
    %831 = vmatpush1.msra.mxu0 0.0
    %832 = vmatprep.subr.mxu0 0.0
    %833 = vmatpush1.msra.mxu0 0.0
    %834 = vmatprep.subr.mxu0 0.0
    %835 = vmatpush1.msra.mxu0 0.0
    %836 = vmatprep.mubr.f32.mxu0 0.0
    %837 = vmatmul.mubr.f32.gmra.mrb[0].mxu0 %v590
    %v838 = vpop.f32.mrb[0].mxu0
    %v839 = vadd.f32 0.0, %v838
    %v840 = vpop.f32.mrb[0].mxu0
    %841 = vdwg.mxu0
    %v842 = vmul.f32 %v839, %v768
    %843 = vadd.xlane.f32.xlu0 %v842
    %v844 = vpop.xlane.xlu0 %843
    %v845 = vadd.f32 %v771, %v844
    %v846 = vmul.f32 %v845, %v673
    %v847 = vadd.f32 %v669, %v846
    %s848 = scalar_lea.vmem [#allocation2], 40
    %v849 = vld [vmem:[%s848] sm:$0xff]
    %s850 = scalar_lea.vmem %s2, 40
    %v851 = vld [vmem:[%s850] sm:$0xff]
    %s852 = scalar_lea.vmem %s1, 40
    %v853 = vld [vmem:[%s852] sm:$0xff]
    %854 = vmax.xlane.f32.xlu0 %v762
    %v855 = vpop.xlane.xlu0 %854
    %v856 = vsub.f32 %v762, %v855
    %v857 = vmul.f32 %v856, 1.442695
    %v858 = vpow.pop %v857
    %859 = vmatprep.subr.mxu0 0.0
    %860 = vmatpush1.msra.mxu0 %v90
    %861 = vmatprep.subr.mxu0 0.0
    %862 = vmatpush1.msra.mxu0 %v92
    %863 = vmatprep.subr.mxu0 0.0
    %864 = vmatpush1.msra.mxu0 %v94
    %865 = vmatprep.subr.mxu0 0.0
    %866 = vmatpush1.msra.mxu0 %v96
    %867 = vmatprep.subr.mxu0 0.0
    %868 = vmatpush1.msra.mxu0 %v98
    %869 = vmatprep.subr.mxu0 0.0
    %870 = vmatpush1.msra.mxu0 %v100
    %871 = vmatprep.subr.mxu0 0.0
    %872 = vmatpush1.msra.mxu0 %v102
    %873 = vmatprep.subr.mxu0 0.0
    %874 = vmatpush1.msra.mxu0 %v104
    %875 = vmatprep.subr.mxu0 0.0
    %876 = vmatpush1.msra.mxu0 %v106
    %877 = vmatprep.subr.mxu0 0.0
    %878 = vmatpush1.msra.mxu0 %v108
    %879 = vmatprep.subr.mxu0 0.0
    %880 = vmatpush1.msra.mxu0 %v110
    %881 = vmatprep.subr.mxu0 0.0
    %882 = vmatpush1.msra.mxu0 %v112
    %883 = vmatprep.subr.mxu0 0.0
    %884 = vmatpush1.msra.mxu0 %v114
    %885 = vmatprep.subr.mxu0 0.0
    %886 = vmatpush1.msra.mxu0 %v116
    %887 = vmatprep.subr.mxu0 0.0
    %888 = vmatpush1.msra.mxu0 %v118
    %889 = vmatprep.subr.mxu0 0.0
    %890 = vmatpush1.msra.mxu0 %v120
    %891 = vmatprep.subr.mxu0 0.0
    %892 = vmatpush1.msra.mxu0 0.0
    %893 = vmatprep.subr.mxu0 0.0
    %894 = vmatpush1.msra.mxu0 0.0
    %895 = vmatprep.subr.mxu0 0.0
    %896 = vmatpush1.msra.mxu0 0.0
    %897 = vmatprep.subr.mxu0 0.0
    %898 = vmatpush1.msra.mxu0 0.0
    %899 = vmatprep.subr.mxu0 0.0
    %900 = vmatpush1.msra.mxu0 0.0
    %901 = vmatprep.subr.mxu0 0.0
    %902 = vmatpush1.msra.mxu0 0.0
    %903 = vmatprep.subr.mxu0 0.0
    %904 = vmatpush1.msra.mxu0 0.0
    %905 = vmatprep.subr.mxu0 0.0
    %906 = vmatpush1.msra.mxu0 0.0
    %907 = vmatprep.subr.mxu0 0.0
    %908 = vmatpush1.msra.mxu0 0.0
    %909 = vmatprep.subr.mxu0 0.0
    %910 = vmatpush1.msra.mxu0 0.0
    %911 = vmatprep.subr.mxu0 0.0
    %912 = vmatpush1.msra.mxu0 0.0
    %913 = vmatprep.subr.mxu0 0.0
    %914 = vmatpush1.msra.mxu0 0.0
    %915 = vmatprep.subr.mxu0 0.0
    %916 = vmatpush1.msra.mxu0 0.0
    %917 = vmatprep.subr.mxu0 0.0
    %918 = vmatpush1.msra.mxu0 0.0
    %919 = vmatprep.subr.mxu0 0.0
    %920 = vmatpush1.msra.mxu0 0.0
    %921 = vmatprep.subr.mxu0 0.0
    %922 = vmatpush1.msra.mxu0 0.0
    %923 = vmatprep.mubr.f32.mxu0 0.0
    %924 = vmatmul.mubr.f32.gmra.mrb[0].mxu0 %v858
    %v925 = vpop.f32.mrb[0].mxu0
    %v926 = vadd.f32 0.0, %v925
    %v927 = vpop.f32.mrb[0].mxu0
    %928 = vdwg.mxu0
    %v929 = vlog2.pop %v926
    %v930 = vmul.f32 %v929, 0.6931472
    %v931 = vadd.f32 %v930, %v855
    %v932 = vadd.f32 %v931, %v72
    %v933 = vadd.f32 %v932, %v849
    %vm934 = vcmp.gt.f32.partialorder %v851, 0.5
    %v935 = vsel %vm934, 1, 0
    %936 = vset.pattern.permute.xlu0 0
    %937 = vperm.xlu0 %936, %v935
    %v938 = vpop.permute.xlu0 %937
    %vm939 = vcmp.eq.s32.totalorder %v938, 1
    %v940 = vsel %vm939, %v933, %v762
    %941 = vset.pattern.permute.xlu0 0
    %942 = vperm.xlu0 %941, %v853
    %v943 = vpop.permute.xlu0 %942
    %vm944 = vcmp.eq.s32.totalorder %v122, %v943
    %v945 = vsel %vm944, 1, 0
    %v946 = vcvt.s32.f32 %v945
    %v947 = vmul.f32 %v849, %v946
    %948 = vadd.xlane.f32.xlu0 %v947
    %v949 = vpop.xlane.xlu0 %948
    %950 = vmatprep.subr.mxu0 0.0
    %951 = vmatpush1.msra.mxu0 %v32
    %952 = vmatprep.subr.mxu0 0.0
    %953 = vmatpush1.msra.mxu0 %v33
    %954 = vmatprep.subr.mxu0 0.0
    %955 = vmatpush1.msra.mxu0 %v34
    %956 = vmatprep.subr.mxu0 0.0
    %957 = vmatpush1.msra.mxu0 %v35
    %958 = vmatprep.subr.mxu0 0.0
    %959 = vmatpush1.msra.mxu0 %v36
    %960 = vmatprep.subr.mxu0 0.0
    %961 = vmatpush1.msra.mxu0 %v37
    %962 = vmatprep.subr.mxu0 0.0
    %963 = vmatpush1.msra.mxu0 %v38
    %964 = vmatprep.subr.mxu0 0.0
    %965 = vmatpush1.msra.mxu0 %v39
    %966 = vmatprep.subr.mxu0 0.0
    %967 = vmatpush1.msra.mxu0 %v40
    %968 = vmatprep.subr.mxu0 0.0
    %969 = vmatpush1.msra.mxu0 %v41
    %970 = vmatprep.subr.mxu0 0.0
    %971 = vmatpush1.msra.mxu0 %v42
    %972 = vmatprep.subr.mxu0 0.0
    %973 = vmatpush1.msra.mxu0 %v43
    %974 = vmatprep.subr.mxu0 0.0
    %975 = vmatpush1.msra.mxu0 %v44
    %976 = vmatprep.subr.mxu0 0.0
    %977 = vmatpush1.msra.mxu0 %v45
    %978 = vmatprep.subr.mxu0 0.0
    %979 = vmatpush1.msra.mxu0 %v46
    %980 = vmatprep.subr.mxu0 0.0
    %981 = vmatpush1.msra.mxu0 %v47
    %982 = vmatprep.subr.mxu0 0.0
    %983 = vmatpush1.msra.mxu0 0.0
    %984 = vmatprep.subr.mxu0 0.0
    %985 = vmatpush1.msra.mxu0 0.0
    %986 = vmatprep.subr.mxu0 0.0
    %987 = vmatpush1.msra.mxu0 0.0
    %988 = vmatprep.subr.mxu0 0.0
    %989 = vmatpush1.msra.mxu0 0.0
    %990 = vmatprep.subr.mxu0 0.0
    %991 = vmatpush1.msra.mxu0 0.0
    %992 = vmatprep.subr.mxu0 0.0
    %993 = vmatpush1.msra.mxu0 0.0
    %994 = vmatprep.subr.mxu0 0.0
    %995 = vmatpush1.msra.mxu0 0.0
    %996 = vmatprep.subr.mxu0 0.0
    %997 = vmatpush1.msra.mxu0 0.0
    %998 = vmatprep.subr.mxu0 0.0
    %999 = vmatpush1.msra.mxu0 0.0
    %1000 = vmatprep.subr.mxu0 0.0
    %1001 = vmatpush1.msra.mxu0 0.0
    %1002 = vmatprep.subr.mxu0 0.0
    %1003 = vmatpush1.msra.mxu0 0.0
    %1004 = vmatprep.subr.mxu0 0.0
    %1005 = vmatpush1.msra.mxu0 0.0
    %1006 = vmatprep.subr.mxu0 0.0
    %1007 = vmatpush1.msra.mxu0 0.0
    %1008 = vmatprep.subr.mxu0 0.0
    %1009 = vmatpush1.msra.mxu0 0.0
    %1010 = vmatprep.subr.mxu0 0.0
    %1011 = vmatpush1.msra.mxu0 0.0
    %1012 = vmatprep.subr.mxu0 0.0
    %1013 = vmatpush1.msra.mxu0 0.0
    %1014 = vmatprep.mubr.f32.mxu0 0.0
    %1015 = vmatmul.mubr.f32.gmra.mrb[0].mxu0 %v768
    %v1016 = vpop.f32.mrb[0].mxu0
    %v1017 = vadd.f32 0.0, %v1016
    %v1018 = vpop.f32.mrb[0].mxu0
    %1019 = vdwg.mxu0
    %v1020 = vmul.f32 %v1017, %v946
    %1021 = vadd.xlane.f32.xlu0 %v1020
    %v1022 = vpop.xlane.xlu0 %1021
    %v1023 = vadd.f32 %v949, %v1022
    %v1024 = vmul.f32 %v1023, %v851
    %v1025 = vadd.f32 %v847, %v1024
    %s1026 = scalar_lea.vmem [#allocation2], 48
    %v1027 = vld [vmem:[%s1026] sm:$0xff]
    %s1028 = scalar_lea.vmem %s2, 48
    %v1029 = vld [vmem:[%s1028] sm:$0xff]
    %s1030 = scalar_lea.vmem %s1, 48
    %v1031 = vld [vmem:[%s1030] sm:$0xff]
    %1032 = vmax.xlane.f32.xlu0 %v940
    %v1033 = vpop.xlane.xlu0 %1032
    %v1034 = vsub.f32 %v940, %v1033
    %v1035 = vmul.f32 %v1034, 1.442695
    %v1036 = vpow.pop %v1035
    %1037 = vmatprep.subr.mxu0 0.0
    %1038 = vmatpush1.msra.mxu0 %v90
    %1039 = vmatprep.subr.mxu0 0.0
    %1040 = vmatpush1.msra.mxu0 %v92
    %1041 = vmatprep.subr.mxu0 0.0
    %1042 = vmatpush1.msra.mxu0 %v94
    %1043 = vmatprep.subr.mxu0 0.0
    %1044 = vmatpush1.msra.mxu0 %v96
    %1045 = vmatprep.subr.mxu0 0.0
    %1046 = vmatpush1.msra.mxu0 %v98
    %1047 = vmatprep.subr.mxu0 0.0
    %1048 = vmatpush1.msra.mxu0 %v100
    %1049 = vmatprep.subr.mxu0 0.0
    %1050 = vmatpush1.msra.mxu0 %v102
    %1051 = vmatprep.subr.mxu0 0.0
    %1052 = vmatpush1.msra.mxu0 %v104
    %1053 = vmatprep.subr.mxu0 0.0
    %1054 = vmatpush1.msra.mxu0 %v106
    %1055 = vmatprep.subr.mxu0 0.0
    %1056 = vmatpush1.msra.mxu0 %v108
    %1057 = vmatprep.subr.mxu0 0.0
    %1058 = vmatpush1.msra.mxu0 %v110
    %1059 = vmatprep.subr.mxu0 0.0
    %1060 = vmatpush1.msra.mxu0 %v112
    %1061 = vmatprep.subr.mxu0 0.0
    %1062 = vmatpush1.msra.mxu0 %v114
    %1063 = vmatprep.subr.mxu0 0.0
    %1064 = vmatpush1.msra.mxu0 %v116
    %1065 = vmatprep.subr.mxu0 0.0
    %1066 = vmatpush1.msra.mxu0 %v118
    %1067 = vmatprep.subr.mxu0 0.0
    %1068 = vmatpush1.msra.mxu0 %v120
    %1069 = vmatprep.subr.mxu0 0.0
    %1070 = vmatpush1.msra.mxu0 0.0
    %1071 = vmatprep.subr.mxu0 0.0
    %1072 = vmatpush1.msra.mxu0 0.0
    %1073 = vmatprep.subr.mxu0 0.0
    %1074 = vmatpush1.msra.mxu0 0.0
    %1075 = vmatprep.subr.mxu0 0.0
    %1076 = vmatpush1.msra.mxu0 0.0
    %1077 = vmatprep.subr.mxu0 0.0
    %1078 = vmatpush1.msra.mxu0 0.0
    %1079 = vmatprep.subr.mxu0 0.0
    %1080 = vmatpush1.msra.mxu0 0.0
    %1081 = vmatprep.subr.mxu0 0.0
    %1082 = vmatpush1.msra.mxu0 0.0
    %1083 = vmatprep.subr.mxu0 0.0
    %1084 = vmatpush1.msra.mxu0 0.0
    %1085 = vmatprep.subr.mxu0 0.0
    %1086 = vmatpush1.msra.mxu0 0.0
    %1087 = vmatprep.subr.mxu0 0.0
    %1088 = vmatpush1.msra.mxu0 0.0
    %1089 = vmatprep.subr.mxu0 0.0
    %1090 = vmatpush1.msra.mxu0 0.0
    %1091 = vmatprep.subr.mxu0 0.0
    %1092 = vmatpush1.msra.mxu0 0.0
    %1093 = vmatprep.subr.mxu0 0.0
    %1094 = vmatpush1.msra.mxu0 0.0
    %1095 = vmatprep.subr.mxu0 0.0
    %1096 = vmatpush1.msra.mxu0 0.0
    %1097 = vmatprep.subr.mxu0 0.0
    %1098 = vmatpush1.msra.mxu0 0.0
    %1099 = vmatprep.subr.mxu0 0.0
    %1100 = vmatpush1.msra.mxu0 0.0
    %1101 = vmatprep.mubr.f32.mxu0 0.0
    %1102 = vmatmul.mubr.f32.gmra.mrb[0].mxu0 %v1036
    %v1103 = vpop.f32.mrb[0].mxu0
    %v1104 = vadd.f32 0.0, %v1103
    %v1105 = vpop.f32.mrb[0].mxu0
    %1106 = vdwg.mxu0
    %v1107 = vlog2.pop %v1104
    %v1108 = vmul.f32 %v1107, 0.6931472
    %v1109 = vadd.f32 %v1108, %v1033
    %v1110 = vadd.f32 %v1109, %v72
    %v1111 = vadd.f32 %v1110, %v1027
    %vm1112 = vcmp.gt.f32.partialorder %v1029, 0.5
    %v1113 = vsel %vm1112, 1, 0
    %1114 = vset.pattern.permute.xlu0 0
    %1115 = vperm.xlu0 %1114, %v1113
    %v1116 = vpop.permute.xlu0 %1115
    %vm1117 = vcmp.eq.s32.totalorder %v1116, 1
    %v1118 = vsel %vm1117, %v1111, %v940
    %1119 = vset.pattern.permute.xlu0 0
    %1120 = vperm.xlu0 %1119, %v1031
    %v1121 = vpop.permute.xlu0 %1120
    %vm1122 = vcmp.eq.s32.totalorder %v122, %v1121
    %v1123 = vsel %vm1122, 1, 0
    %v1124 = vcvt.s32.f32 %v1123
    %v1125 = vmul.f32 %v1027, %v1124
    %1126 = vadd.xlane.f32.xlu0 %v1125
    %v1127 = vpop.xlane.xlu0 %1126
    %1128 = vmatprep.subr.mxu0 0.0
    %1129 = vmatpush1.msra.mxu0 %v32
    %1130 = vmatprep.subr.mxu0 0.0
    %1131 = vmatpush1.msra.mxu0 %v33
    %1132 = vmatprep.subr.mxu0 0.0
    %1133 = vmatpush1.msra.mxu0 %v34
    %1134 = vmatprep.subr.mxu0 0.0
    %1135 = vmatpush1.msra.mxu0 %v35
    %1136 = vmatprep.subr.mxu0 0.0
    %1137 = vmatpush1.msra.mxu0 %v36
    %1138 = vmatprep.subr.mxu0 0.0
    %1139 = vmatpush1.msra.mxu0 %v37
    %1140 = vmatprep.subr.mxu0 0.0
    %1141 = vmatpush1.msra.mxu0 %v38
    %1142 = vmatprep.subr.mxu0 0.0
    %1143 = vmatpush1.msra.mxu0 %v39
    %1144 = vmatprep.subr.mxu0 0.0
    %1145 = vmatpush1.msra.mxu0 %v40
    %1146 = vmatprep.subr.mxu0 0.0
    %1147 = vmatpush1.msra.mxu0 %v41
    %1148 = vmatprep.subr.mxu0 0.0
    %1149 = vmatpush1.msra.mxu0 %v42
    %1150 = vmatprep.subr.mxu0 0.0
    %1151 = vmatpush1.msra.mxu0 %v43
    %1152 = vmatprep.subr.mxu0 0.0
    %1153 = vmatpush1.msra.mxu0 %v44
    %1154 = vmatprep.subr.mxu0 0.0
    %1155 = vmatpush1.msra.mxu0 %v45
    %1156 = vmatprep.subr.mxu0 0.0
    %1157 = vmatpush1.msra.mxu0 %v46
    %1158 = vmatprep.subr.mxu0 0.0
    %1159 = vmatpush1.msra.mxu0 %v47
    %1160 = vmatprep.subr.mxu0 0.0
    %1161 = vmatpush1.msra.mxu0 0.0
    %1162 = vmatprep.subr.mxu0 0.0
    %1163 = vmatpush1.msra.mxu0 0.0
    %1164 = vmatprep.subr.mxu0 0.0
    %1165 = vmatpush1.msra.mxu0 0.0
    %1166 = vmatprep.subr.mxu0 0.0
    %1167 = vmatpush1.msra.mxu0 0.0
    %1168 = vmatprep.subr.mxu0 0.0
    %1169 = vmatpush1.msra.mxu0 0.0
    %1170 = vmatprep.subr.mxu0 0.0
    %1171 = vmatpush1.msra.mxu0 0.0
    %1172 = vmatprep.subr.mxu0 0.0
    %1173 = vmatpush1.msra.mxu0 0.0
    %1174 = vmatprep.subr.mxu0 0.0
    %1175 = vmatpush1.msra.mxu0 0.0
    %1176 = vmatprep.subr.mxu0 0.0
    %1177 = vmatpush1.msra.mxu0 0.0
    %1178 = vmatprep.subr.mxu0 0.0
    %1179 = vmatpush1.msra.mxu0 0.0
    %1180 = vmatprep.subr.mxu0 0.0
    %1181 = vmatpush1.msra.mxu0 0.0
    %1182 = vmatprep.subr.mxu0 0.0
    %1183 = vmatpush1.msra.mxu0 0.0
    %1184 = vmatprep.subr.mxu0 0.0
    %1185 = vmatpush1.msra.mxu0 0.0
    %1186 = vmatprep.subr.mxu0 0.0
    %1187 = vmatpush1.msra.mxu0 0.0
    %1188 = vmatprep.subr.mxu0 0.0
    %1189 = vmatpush1.msra.mxu0 0.0
    %1190 = vmatprep.subr.mxu0 0.0
    %1191 = vmatpush1.msra.mxu0 0.0
    %1192 = vmatprep.mubr.f32.mxu0 0.0
    %1193 = vmatmul.mubr.f32.gmra.mrb[0].mxu0 %v946
    %v1194 = vpop.f32.mrb[0].mxu0
    %v1195 = vadd.f32 0.0, %v1194
    %v1196 = vpop.f32.mrb[0].mxu0
    %1197 = vdwg.mxu0
    %v1198 = vmul.f32 %v1195, %v1124
    %1199 = vadd.xlane.f32.xlu0 %v1198
    %v1200 = vpop.xlane.xlu0 %1199
    %v1201 = vadd.f32 %v1127, %v1200
    %v1202 = vmul.f32 %v1201, %v1029
    %v1203 = vadd.f32 %v1025, %v1202
    %s1204 = scalar_lea.vmem [#allocation2], 56
    %v1205 = vld [vmem:[%s1204] sm:$0xff]
    %s1206 = scalar_lea.vmem %s2, 56
    %v1207 = vld [vmem:[%s1206] sm:$0xff]
    %s1208 = scalar_lea.vmem %s1, 56
    %v1209 = vld [vmem:[%s1208] sm:$0xff]
    %1210 = vmax.xlane.f32.xlu0 %v1118
    %v1211 = vpop.xlane.xlu0 %1210
    %v1212 = vsub.f32 %v1118, %v1211
    %v1213 = vmul.f32 %v1212, 1.442695
    %v1214 = vpow.pop %v1213
    %1215 = vmatprep.subr.mxu0 0.0
    %1216 = vmatpush1.msra.mxu0 %v90
    %1217 = vmatprep.subr.mxu0 0.0
    %1218 = vmatpush1.msra.mxu0 %v92
    %1219 = vmatprep.subr.mxu0 0.0
    %1220 = vmatpush1.msra.mxu0 %v94
    %1221 = vmatprep.subr.mxu0 0.0
    %1222 = vmatpush1.msra.mxu0 %v96
    %1223 = vmatprep.subr.mxu0 0.0
    %1224 = vmatpush1.msra.mxu0 %v98
    %1225 = vmatprep.subr.mxu0 0.0
    %1226 = vmatpush1.msra.mxu0 %v100
    %1227 = vmatprep.subr.mxu0 0.0
    %1228 = vmatpush1.msra.mxu0 %v102
    %1229 = vmatprep.subr.mxu0 0.0
    %1230 = vmatpush1.msra.mxu0 %v104
    %1231 = vmatprep.subr.mxu0 0.0
    %1232 = vmatpush1.msra.mxu0 %v106
    %1233 = vmatprep.subr.mxu0 0.0
    %1234 = vmatpush1.msra.mxu0 %v108
    %1235 = vmatprep.subr.mxu0 0.0
    %1236 = vmatpush1.msra.mxu0 %v110
    %1237 = vmatprep.subr.mxu0 0.0
    %1238 = vmatpush1.msra.mxu0 %v112
    %1239 = vmatprep.subr.mxu0 0.0
    %1240 = vmatpush1.msra.mxu0 %v114
    %1241 = vmatprep.subr.mxu0 0.0
    %1242 = vmatpush1.msra.mxu0 %v116
    %1243 = vmatprep.subr.mxu0 0.0
    %1244 = vmatpush1.msra.mxu0 %v118
    %1245 = vmatprep.subr.mxu0 0.0
    %1246 = vmatpush1.msra.mxu0 %v120
    %1247 = vmatprep.subr.mxu0 0.0
    %1248 = vmatpush1.msra.mxu0 0.0
    %1249 = vmatprep.subr.mxu0 0.0
    %1250 = vmatpush1.msra.mxu0 0.0
    %1251 = vmatprep.subr.mxu0 0.0
    %1252 = vmatpush1.msra.mxu0 0.0
    %1253 = vmatprep.subr.mxu0 0.0
    %1254 = vmatpush1.msra.mxu0 0.0
    %1255 = vmatprep.subr.mxu0 0.0
    %1256 = vmatpush1.msra.mxu0 0.0
    %1257 = vmatprep.subr.mxu0 0.0
    %1258 = vmatpush1.msra.mxu0 0.0
    %1259 = vmatprep.subr.mxu0 0.0
    %1260 = vmatpush1.msra.mxu0 0.0
    %1261 = vmatprep.subr.mxu0 0.0
    %1262 = vmatpush1.msra.mxu0 0.0
    %1263 = vmatprep.subr.mxu0 0.0
    %1264 = vmatpush1.msra.mxu0 0.0
    %1265 = vmatprep.subr.mxu0 0.0
    %1266 = vmatpush1.msra.mxu0 0.0
    %1267 = vmatprep.subr.mxu0 0.0
    %1268 = vmatpush1.msra.mxu0 0.0
    %1269 = vmatprep.subr.mxu0 0.0
    %1270 = vmatpush1.msra.mxu0 0.0
    %1271 = vmatprep.subr.mxu0 0.0
    %1272 = vmatpush1.msra.mxu0 0.0
    %1273 = vmatprep.subr.mxu0 0.0
    %1274 = vmatpush1.msra.mxu0 0.0
    %1275 = vmatprep.subr.mxu0 0.0
    %1276 = vmatpush1.msra.mxu0 0.0
    %1277 = vmatprep.subr.mxu0 0.0
    %1278 = vmatpush1.msra.mxu0 0.0
    %1279 = vmatprep.mubr.f32.mxu0 0.0
    %1280 = vmatmul.mubr.f32.gmra.mrb[0].mxu0 %v1214
    %v1281 = vpop.f32.mrb[0].mxu0
    %v1282 = vadd.f32 0.0, %v1281
    %v1283 = vpop.f32.mrb[0].mxu0
    %1284 = vdwg.mxu0
    %v1285 = vlog2.pop %v1282
    %v1286 = vmul.f32 %v1285, 0.6931472
    %v1287 = vadd.f32 %v1286, %v1211
    %v1288 = vadd.f32 %v1287, %v72
    %v1289 = vadd.f32 %v1288, %v1205
    %vm1290 = vcmp.gt.f32.partialorder %v1207, 0.5
    %v1291 = vsel %vm1290, 1, 0
    %1292 = vset.pattern.permute.xlu0 0
    %1293 = vperm.xlu0 %1292, %v1291
    %v1294 = vpop.permute.xlu0 %1293
    %vm1295 = vcmp.eq.s32.totalorder %v1294, 1
    %v1296 = vsel %vm1295, %v1289, %v1118
    %1297 = vset.pattern.permute.xlu0 0
    %1298 = vperm.xlu0 %1297, %v1209
    %v1299 = vpop.permute.xlu0 %1298
    %vm1300 = vcmp.eq.s32.totalorder %v122, %v1299
    %v1301 = vsel %vm1300, 1, 0
    %v1302 = vcvt.s32.f32 %v1301
    %v1303 = vmul.f32 %v1205, %v1302
    %1304 = vadd.xlane.f32.xlu0 %v1303
    %v1305 = vpop.xlane.xlu0 %1304
    %1306 = vmatprep.subr.mxu0 0.0
    %1307 = vmatpush1.msra.mxu0 %v32
    %1308 = vmatprep.subr.mxu0 0.0
    %1309 = vmatpush1.msra.mxu0 %v33
    %1310 = vmatprep.subr.mxu0 0.0
    %1311 = vmatpush1.msra.mxu0 %v34
    %1312 = vmatprep.subr.mxu0 0.0
    %1313 = vmatpush1.msra.mxu0 %v35
    %1314 = vmatprep.subr.mxu0 0.0
    %1315 = vmatpush1.msra.mxu0 %v36
    %1316 = vmatprep.subr.mxu0 0.0
    %1317 = vmatpush1.msra.mxu0 %v37
    %1318 = vmatprep.subr.mxu0 0.0
    %1319 = vmatpush1.msra.mxu0 %v38
    %1320 = vmatprep.subr.mxu0 0.0
    %1321 = vmatpush1.msra.mxu0 %v39
    %1322 = vmatprep.subr.mxu0 0.0
    %1323 = vmatpush1.msra.mxu0 %v40
    %1324 = vmatprep.subr.mxu0 0.0
    %1325 = vmatpush1.msra.mxu0 %v41
    %1326 = vmatprep.subr.mxu0 0.0
    %1327 = vmatpush1.msra.mxu0 %v42
    %1328 = vmatprep.subr.mxu0 0.0
    %1329 = vmatpush1.msra.mxu0 %v43
    %1330 = vmatprep.subr.mxu0 0.0
    %1331 = vmatpush1.msra.mxu0 %v44
    %1332 = vmatprep.subr.mxu0 0.0
    %1333 = vmatpush1.msra.mxu0 %v45
    %1334 = vmatprep.subr.mxu0 0.0
    %1335 = vmatpush1.msra.mxu0 %v46
    %1336 = vmatprep.subr.mxu0 0.0
    %1337 = vmatpush1.msra.mxu0 %v47
    %1338 = vmatprep.subr.mxu0 0.0
    %1339 = vmatpush1.msra.mxu0 0.0
    %1340 = vmatprep.subr.mxu0 0.0
    %1341 = vmatpush1.msra.mxu0 0.0
    %1342 = vmatprep.subr.mxu0 0.0
    %1343 = vmatpush1.msra.mxu0 0.0
    %1344 = vmatprep.subr.mxu0 0.0
    %1345 = vmatpush1.msra.mxu0 0.0
    %1346 = vmatprep.subr.mxu0 0.0
    %1347 = vmatpush1.msra.mxu0 0.0
    %1348 = vmatprep.subr.mxu0 0.0
    %1349 = vmatpush1.msra.mxu0 0.0
    %1350 = vmatprep.subr.mxu0 0.0
    %1351 = vmatpush1.msra.mxu0 0.0
    %1352 = vmatprep.subr.mxu0 0.0
    %1353 = vmatpush1.msra.mxu0 0.0
    %1354 = vmatprep.subr.mxu0 0.0
    %1355 = vmatpush1.msra.mxu0 0.0
    %1356 = vmatprep.subr.mxu0 0.0
    %1357 = vmatpush1.msra.mxu0 0.0
    %1358 = vmatprep.subr.mxu0 0.0
    %1359 = vmatpush1.msra.mxu0 0.0
    %1360 = vmatprep.subr.mxu0 0.0
    %1361 = vmatpush1.msra.mxu0 0.0
    %1362 = vmatprep.subr.mxu0 0.0
    %1363 = vmatpush1.msra.mxu0 0.0
    %1364 = vmatprep.subr.mxu0 0.0
    %1365 = vmatpush1.msra.mxu0 0.0
    %1366 = vmatprep.subr.mxu0 0.0
    %1367 = vmatpush1.msra.mxu0 0.0
    %1368 = vmatprep.subr.mxu0 0.0
    %1369 = vmatpush1.msra.mxu0 0.0
    %1370 = vmatprep.mubr.f32.mxu0 0.0
    %1371 = vmatmul.mubr.f32.gmra.mrb[0].mxu0 %v1124
    %v1372 = vpop.f32.mrb[0].mxu0
    %v1373 = vadd.f32 0.0, %v1372
    %v1374 = vpop.f32.mrb[0].mxu0
    %1375 = vdwg.mxu0
    %v1376 = vmul.f32 %v1373, %v1302
    %1377 = vadd.xlane.f32.xlu0 %v1376
    %v1378 = vpop.xlane.xlu0 %1377
    %v1379 = vadd.f32 %v1305, %v1378
    %v1380 = vmul.f32 %v1379, %v1207
    %v1381 = vadd.f32 %v1203, %v1380
    %1382 = vmax.xlane.f32.xlu0 %v1296
    %v1383 = vpop.xlane.xlu0 %1382
    %v1384 = vsub.f32 %v1296, %v1383
    %v1385 = vmul.f32 %v1384, 1.442695
    %v1386 = vpow.pop %v1385
    %1387 = vadd.xlane.f32.xlu0 %v1386
    %v1388 = vpop.xlane.xlu0 %1387
    %v1389 = vlog2.pop %v1388
    %v1390 = vmul.f32 %v1389, 0.6931472
    %v1391 = vadd.f32 %v1390, %v1383
    %v1392 = vsub.f32 %v1391, %v1381
    %1394 = vset.pattern.permute.xlu0 0
    %1395 = vperm.xlu0 %1394, %v1392
    %v1396 = vpop.permute.xlu0 %1395
    %1398 = vst [vmem:[#allocation5] sm:$0xff] %v1396
    // Predicated region
    $region22: #{tpu_custom_call.1} parent=1 // pred_check
      _
    $region23: #{tpu_custom_call.1} parent=1 // pred_check_branch
      %1400 = sbr.rel (0) target = $region25
    $region24: #{tpu_custom_call.1} parent=1 // pred_region
      %s1402 = ssub.s32 128, 128
      %1403 = vsyncadd [#allocation4], %s1402
      %s1405 = sshll.u32 [#allocation5], 4
      %s1406 = int_to_ptr.vmem [resolvable:$true] %s1405
      %1408 = dma.vmem_to_hbm [thread:$0]  %s1406, 128, %s4, [#allocation4]
    $region25: #{tpu_custom_call.1} parent=1 // pred_fallthru
      _
    // Predicated region
    $region26: #{tpu_custom_call.1} parent=1 // pred_check
      _
    $region27: #{tpu_custom_call.1} parent=1 // pred_check_branch
      %1410 = sbr.rel (0) target = $region29
    $region28: #{tpu_custom_call.1} parent=1 // pred_region
      %1411 = dma.done [#allocation4], 128
    $region29: #{tpu_custom_call.1} parent=1 // pred_fallthru
      _
    %1412 = vsyncpa [#allocation3], 1
    %1413 = vsyncpa [#allocation4], 1

</llo_original>
